<compile_context>
chip_gen: v5e
topology: v5e:2x2
jax: 0.10.0
libtpu: 0.0.40
codegen_flags: <defaults>
</compile_context>

<pallas_src>
import math

import jax
import jax.numpy as jnp
from jax import lax
from jax.experimental import pallas as pl
from jax.experimental.pallas import tpu as pltpu


def _round_up(x, m):
    return ((x + m - 1) // m) * m


# ------------------------------------------------------------------- kernel --
def _make_kernel(*, n_taps, offsets, cout_pad, tn, num_chunks):
    inv_sqrt2 = 1.0 / math.sqrt(2.0)
    inv_sqrt2pi = 1.0 / math.sqrt(2.0 * math.pi)

    def kernel(x_ref, w1_ref, w2_ref, o_ref):
        # x_ref : (Crows_pad, Flat_len)          rows = [mu(Cin) | var(Cin) | ones | 0-pad]
        # w1_ref: (K*K, 2*Cout_pad, Crows_pad)   linear block weight per tap
        # w2_ref: (K*K,   Cout_pad, Crows_pad)   expS weight for the squared (mu^2) term (f32)
        # o_ref : (2*Cout_pad, NE_pad)           rows [0:Cout_pad) relu mean, rest relu var
        w1 = [w1_ref[t] for t in range(n_taps)]            # hoisted once; tiny
        w2 = [w2_ref[t] for t in range(n_taps)]

        for c in range(num_chunks):                        # static unroll over pixel chunks
            base = c * tn
            acc = jnp.zeros((2 * cout_pad, tn), jnp.float32)
            sacc = jnp.zeros((cout_pad, tn), jnp.float32)
            for t in range(n_taps):
                off = base + offsets[t]
                xs = x_ref[:, off:off + tn]                # shifted raw-activation slice
                acc = acc + jnp.dot(w1[t], xs, preferred_element_type=jnp.float32)
                xf = xs.astype(jnp.float32)
                sacc = sacc + jnp.dot(w2[t], xf * xf, preferred_element_type=jnp.float32)

            mu_f = acc[:cout_pad, :]
            var_f = acc[cout_pad:2 * cout_pad, :] + sacc + 1e-12   # guard rsqrt(0)

            # relu_moments(mu_f, sqrt(var_f)) -- f32 throughout, transcendentals on the EUP.
            inv_sig = lax.rsqrt(var_f)
            inv_sig = inv_sig * (1.5 - 0.5 * var_f * inv_sig * inv_sig)   # Newton refine
            sig = var_f * inv_sig
            a = mu_f * inv_sig

            # Phi(a) via A&S 7.1.26 erf (|err| < 1.5e-7); EUP reciprocal + one Newton step.
            z = a * inv_sqrt2
            sgn = jnp.where(z >= 0.0, 1.0, -1.0)
            az = jnp.abs(z)
            d = 1.0 + 0.3275911 * az
            r = pl.reciprocal(d, approx=True)
            r = r * (2.0 - d * r)
            e = jnp.exp(-0.5 * a * a)                      # shared by cdf and pdf
            poly = r * (0.254829592
                        + r * (-0.284496736
                               + r * (1.421413741
                                      + r * (-1.453152027 + r * 1.061405429))))
            cdf = 0.5 * (1.0 + sgn * (1.0 - poly * e))
            pdf = inv_sqrt2pi * e

            relu_mean = mu_f * cdf + sig * pdf
            relu_var = (var_f + mu_f * mu_f) * cdf + mu_f * sig * pdf - relu_mean * relu_mean
            relu_var = jnp.maximum(relu_var, 0.0)          # clamp f32-cancellation negatives

            o_ref[0:cout_pad, base:base + tn] = relu_mean
            o_ref[cout_pad:2 * cout_pad, base:base + tn] = relu_var

    return kernel


# ------------------------------------------------------------------ wrapper --
def conv_clt_forward(mu_h, var_h, M, logS, Mbias, *, stride=1, padding=0,
                     isinput=False, tile_n=1024, matmul_dtype=jnp.bfloat16):
    assert stride == 1, "fused Pallas path implements stride=1, dilation=1, groups=1"
    B, Cin, H, W = mu_h.shape
    Cout, Cin_w, K, K_w = M.shape
    assert Cin_w == Cin and K_w == K

    p = padding
    Hp, Wp = H + 2 * p, W + 2 * p
    Ho, Wo = Hp - K + 1, Wp - K + 1
    assert Ho > 0 and Wo > 0

    cout_pad = _round_up(Cout, 8)
    crows = 2 * Cin + 1                        # [mu | var | ones(bias)]
    crows_pad = _round_up(crows, 16)           # multiple of 16 -> native bf16 (16,128) tiling

    # "extended" pixel axis: y*Wp + x for y in [0,Ho); columns x in [Wo,Wp) are garbage
    # (sliced off afterwards) so every tap's input slice is one contiguous flat window.
    NE = Ho * Wp
    tn = min(_round_up(max(tile_n, 128), 128), _round_up(NE, 128))
    ne_pad = _round_up(NE, tn)
    num_chunks = ne_pad // tn
    off_max = (K - 1) * Wp + (K - 1)
    flat_len = _round_up(ne_pad + off_max, 128)

    f32 = jnp.float32
    # --- activations: cast early (halves host traffic in the bf16 path), pad spatially,
    #     append a ones row for the bias, flatten pixels onto the lane axis.
    x = jnp.concatenate([mu_h.astype(matmul_dtype), var_h.astype(matmul_dtype)], axis=1)
    x = jnp.pad(x, ((0, 0), (0, 0), (p, p), (p, p)))                     # (B, 2Cin, Hp, Wp)
    ones = jnp.ones((B, 1, Hp, Wp), matmul_dtype)
    x = jnp.concatenate([x, ones], axis=1)                               # (B, 2Cin+1, Hp, Wp)
    x = x.reshape(B, crows, Hp * Wp)
    x = jnp.pad(x, ((0, 0), (0, crows_pad - crows), (0, flat_len - Hp * Wp)))

    # --- per-tap block weights (built in f32, cast once).
    Mf = M.astype(f32)
    Sf = jnp.exp(jnp.clip(logS.astype(f32), -11.0, 11.0))
    Wm = jnp.transpose(Mf, (2, 3, 0, 1)).reshape(K * K, Cout, Cin)       # tap t = ki*K + kj
    Ws = jnp.transpose(Sf, (2, 3, 0, 1)).reshape(K * K, Cout, Cin)
    w1 = jnp.zeros((K * K, 2 * cout_pad, crows_pad), f32)
    w1 = w1.at[:, 0:Cout, 0:Cin].set(Wm)                                 # mu_f = conv(mu, M)
    if not isinput:
        # var_f linear part = conv(var, expS + M^2); (expS may be absorbed by bf16 rounding
        # of M^2 -- negligible relative to overall bf16 error, exact in the f32 path).
        w1 = w1.at[:, cout_pad:cout_pad + Cout, Cin:2 * Cin].set(Ws + Wm * Wm)
    w1 = w1.at[0, 0:Cout, 2 * Cin].set(Mbias.astype(f32))                # bias via ones row
    w2 = jnp.zeros((K * K, cout_pad, crows_pad), f32)
    w2 = w2.at[:, 0:Cout, 0:Cin].set(Ws)                                 # conv(mu^2, expS)
    w1 = w1.astype(matmul_dtype)                                         # w2 stays f32

    offsets = tuple(ki * Wp + kj for ki in range(K) for kj in range(K))
    kernel = _make_kernel(n_taps=K * K, offsets=offsets, cout_pad=cout_pad,
                          tn=tn, num_chunks=num_chunks)

    bytes_accessed = int(x.size) * int(x.dtype.itemsize) \
        + int(w1.size) * int(w1.dtype.itemsize) + int(w2.size) * 4 \
        + B * 2 * cout_pad * ne_pad * 4
    cost = pl.CostEstimate(
        flops=2 * B * ne_pad * (K * K) * crows_pad * (3 * cout_pad),
        transcendentals=3 * B * ne_pad * cout_pad,
        bytes_accessed=bytes_accessed)

    out = pl.pallas_call(
        kernel,
        out_shape=jax.ShapeDtypeStruct((B, 2 * cout_pad, ne_pad), jnp.float32),
        grid_spec=pltpu.PrefetchScalarGridSpec(
            num_scalar_prefetch=0,
            grid=(B,),
            in_specs=[
                pl.BlockSpec((None, crows_pad, flat_len), lambda b: (b, 0, 0)),
                pl.BlockSpec((K * K, 2 * cout_pad, crows_pad), lambda b: (0, 0, 0)),
                pl.BlockSpec((K * K, cout_pad, crows_pad), lambda b: (0, 0, 0)),
            ],
            out_specs=pl.BlockSpec((None, 2 * cout_pad, ne_pad), lambda b: (b, 0, 0)),
        ),
        compiler_params=pltpu.CompilerParams(dimension_semantics=("parallel",)),
        cost_estimate=cost,
    )(x, w1, w2)

    # slice-only epilogue (no transpose): (B, 2*Cout_pad, NE) -> NCHW mean/var
    val = out[:, :, :NE].reshape(B, 2 * cout_pad, Ho, Wp)[:, :, :, :Wo]
    mean = val[:, 0:Cout]
    var = val[:, cout_pad:cout_pad + Cout]
    return mean, var


# ---------------------------------------------------------------- reference --
def conv_clt_reference(mu_h, var_h, M, logS, Mbias, *, stride=1, padding=0):
    dn = ("NCHW", "OIHW", "NCHW")
    conv = lambda x, w: lax.conv_general_dilated(
        x, w, (stride, stride), ((padding, padding), (padding, padding)),
        dimension_numbers=dn)
    var_s = jnp.exp(jnp.clip(logS, -11.0, 11.0))
    mu_f = conv(mu_h, M) + Mbias[None, :, None, None]
    var_f = conv(var_h + mu_h ** 2, var_s) + conv(var_h, M ** 2)
    sig = jnp.sqrt(var_f)
    a = mu_f / sig
    cdf = 0.5 * (1.0 + lax.erf(a / math.sqrt(2.0)))
    pdf = jnp.exp(-0.5 * a ** 2) / math.sqrt(2.0 * math.pi)
    rm = mu_f * cdf + sig * pdf
    rv = (sig ** 2 + mu_f ** 2) * cdf + mu_f * sig * pdf - rm ** 2
    return rm, rv


# -------------------------------------------------------------------- main --
if __name__ == "__main__":
    # module config: ConvCLTLayer(in_channels=4, out_channels=8, kernel_size=3,
    #                             stride=1, padding=1, isinput=False)
    B, Cin, H, W = 2, 4, 16, 16
    Cout, K = 8, 3
    stride, padding = 1, 1

    key = jax.random.PRNGKey(0)
    k1, k2, k3, k4 = jax.random.split(key, 4)

    # deterministic parameter init matching reset_parameters(): n = Cin * (K-1)!
    n = Cin
    for k in range(1, K):
        n *= k
    M = jax.random.normal(k1, (Cout, Cin, K, K), jnp.float32) / math.sqrt(n)
    logS = -9.0 + 0.001 * jax.random.normal(k2, (Cout, Cin, K, K), jnp.float32)
    Mbias = jnp.zeros((Cout,), jnp.float32)

    mu_h = jax.random.normal(k3, (B, Cin, H, W), jnp.float32)
    var_h = 0.1 + 0.5 * jax.random.uniform(k4, (B, Cin, H, W), jnp.float32)

    ref_mean, ref_var = conv_clt_reference(mu_h, var_h, M, logS, Mbias,
                                           stride=stride, padding=padding)

    # f32 matmul path (tight check against the f32 XLA reference)
    mean, var = conv_clt_forward(mu_h, var_h, M, logS, Mbias,
                                 stride=stride, padding=padding,
                                 tile_n=1024, matmul_dtype=jnp.float32)
    jax.block_until_ready((mean, var))
    assert mean.shape == (B, Cout, H, W) and var.shape == (B, Cout, H, W)
    assert jnp.allclose(mean, ref_mean, rtol=1e-3, atol=2e-4), "f32 mean mismatch"
    assert jnp.allclose(var, ref_var, rtol=1e-3, atol=2e-4), "f32 var mismatch"

    # bf16 matmul-input path (default; halves activation HBM traffic on v5e/v6e/v7x while
    # keeping f32 accumulation and f32 relu-moments math -- loose tolerance reflects bf16
    # inputs only)
    mean16, var16 = conv_clt_forward(mu_h, var_h, M, logS, Mbias,
                                     stride=stride, padding=padding,
                                     tile_n=1024, matmul_dtype=jnp.bfloat16)
    jax.block_until_ready((mean16, var16))
    assert jnp.allclose(mean16, ref_mean, rtol=6e-2, atol=3e-2), "bf16 mean mismatch"
    assert jnp.allclose(var16, ref_var, rtol=6e-2, atol=3e-2), "bf16 var mismatch"

    print("KERNEL_OK")
</pallas_src>

<mosaic_0001>
module attributes {stable_mosaic.version = 11 : i64} {
  func.func @kernel(%arg0: i32, %arg1: memref<1x16x512xf32, #tpu.memory_space<vmem>>, %arg2: memref<9x16x16xf32, #tpu.memory_space<vmem>>, %arg3: memref<9x8x16xf32, #tpu.memory_space<vmem>>, %arg4: memref<1x16x384xf32, #tpu.memory_space<vmem>>) attributes {dimension_semantics = [#tpu.dimension_semantics<parallel>], iteration_bounds = array<i64: 2>, scalar_prefetch = 0 : i64, scratch_operands = 0 : i64, tpu.core_type = #tpu.core_type<tc>, window_params = [{transform_indices = @transform_0, window_bounds = array<i64: 1, 16, 512>}, {pipeline_mode = #tpu.pipeline_mode<synchronous>, transform_indices = @transform_1, window_bounds = array<i64: 9, 16, 16>}, {pipeline_mode = #tpu.pipeline_mode<synchronous>, transform_indices = @transform_2, window_bounds = array<i64: 9, 8, 16>}, {transform_indices = @transform_3, window_bounds = array<i64: 1, 16, 384>}]} {
    %c0 = arith.constant 0 : index
    %c0_0 = arith.constant 0 : index
    %c0_1 = arith.constant 0 : index
    %0 = vector.load %arg2[%c0, %c0_0, %c0_1] : memref<9x16x16xf32, #tpu.memory_space<vmem>>, vector<1x16x16xf32>
    %1 = vector.shape_cast %0 : vector<1x16x16xf32> to vector<16x16xf32>
    %c1 = arith.constant 1 : index
    %c0_2 = arith.constant 0 : index
    %c0_3 = arith.constant 0 : index
    %2 = vector.load %arg2[%c1, %c0_2, %c0_3] : memref<9x16x16xf32, #tpu.memory_space<vmem>>, vector<1x16x16xf32>
    %3 = vector.shape_cast %2 : vector<1x16x16xf32> to vector<16x16xf32>
    %c2 = arith.constant 2 : index
    %c0_4 = arith.constant 0 : index
    %c0_5 = arith.constant 0 : index
    %4 = vector.load %arg2[%c2, %c0_4, %c0_5] : memref<9x16x16xf32, #tpu.memory_space<vmem>>, vector<1x16x16xf32>
    %5 = vector.shape_cast %4 : vector<1x16x16xf32> to vector<16x16xf32>
    %c3 = arith.constant 3 : index
    %c0_6 = arith.constant 0 : index
    %c0_7 = arith.constant 0 : index
    %6 = vector.load %arg2[%c3, %c0_6, %c0_7] : memref<9x16x16xf32, #tpu.memory_space<vmem>>, vector<1x16x16xf32>
    %7 = vector.shape_cast %6 : vector<1x16x16xf32> to vector<16x16xf32>
    %c4 = arith.constant 4 : index
    %c0_8 = arith.constant 0 : index
    %c0_9 = arith.constant 0 : index
    %8 = vector.load %arg2[%c4, %c0_8, %c0_9] : memref<9x16x16xf32, #tpu.memory_space<vmem>>, vector<1x16x16xf32>
    %9 = vector.shape_cast %8 : vector<1x16x16xf32> to vector<16x16xf32>
    %c5 = arith.constant 5 : index
    %c0_10 = arith.constant 0 : index
    %c0_11 = arith.constant 0 : index
    %10 = vector.load %arg2[%c5, %c0_10, %c0_11] : memref<9x16x16xf32, #tpu.memory_space<vmem>>, vector<1x16x16xf32>
    %11 = vector.shape_cast %10 : vector<1x16x16xf32> to vector<16x16xf32>
    %c6 = arith.constant 6 : index
    %c0_12 = arith.constant 0 : index
    %c0_13 = arith.constant 0 : index
    %12 = vector.load %arg2[%c6, %c0_12, %c0_13] : memref<9x16x16xf32, #tpu.memory_space<vmem>>, vector<1x16x16xf32>
    %13 = vector.shape_cast %12 : vector<1x16x16xf32> to vector<16x16xf32>
    %c7 = arith.constant 7 : index
    %c0_14 = arith.constant 0 : index
    %c0_15 = arith.constant 0 : index
    %14 = vector.load %arg2[%c7, %c0_14, %c0_15] : memref<9x16x16xf32, #tpu.memory_space<vmem>>, vector<1x16x16xf32>
    %15 = vector.shape_cast %14 : vector<1x16x16xf32> to vector<16x16xf32>
    %c8 = arith.constant 8 : index
    %c0_16 = arith.constant 0 : index
    %c0_17 = arith.constant 0 : index
    %16 = vector.load %arg2[%c8, %c0_16, %c0_17] : memref<9x16x16xf32, #tpu.memory_space<vmem>>, vector<1x16x16xf32>
    %17 = vector.shape_cast %16 : vector<1x16x16xf32> to vector<16x16xf32>
    %c0_18 = arith.constant 0 : index
    %c0_19 = arith.constant 0 : index
    %c0_20 = arith.constant 0 : index
    %18 = vector.load %arg3[%c0_18, %c0_19, %c0_20] : memref<9x8x16xf32, #tpu.memory_space<vmem>>, vector<1x8x16xf32>
    %19 = vector.shape_cast %18 : vector<1x8x16xf32> to vector<8x16xf32>
    %c1_21 = arith.constant 1 : index
    %c0_22 = arith.constant 0 : index
    %c0_23 = arith.constant 0 : index
    %20 = vector.load %arg3[%c1_21, %c0_22, %c0_23] : memref<9x8x16xf32, #tpu.memory_space<vmem>>, vector<1x8x16xf32>
    %21 = vector.shape_cast %20 : vector<1x8x16xf32> to vector<8x16xf32>
    %c2_24 = arith.constant 2 : index
    %c0_25 = arith.constant 0 : index
    %c0_26 = arith.constant 0 : index
    %22 = vector.load %arg3[%c2_24, %c0_25, %c0_26] : memref<9x8x16xf32, #tpu.memory_space<vmem>>, vector<1x8x16xf32>
    %23 = vector.shape_cast %22 : vector<1x8x16xf32> to vector<8x16xf32>
    %c3_27 = arith.constant 3 : index
    %c0_28 = arith.constant 0 : index
    %c0_29 = arith.constant 0 : index
    %24 = vector.load %arg3[%c3_27, %c0_28, %c0_29] : memref<9x8x16xf32, #tpu.memory_space<vmem>>, vector<1x8x16xf32>
    %25 = vector.shape_cast %24 : vector<1x8x16xf32> to vector<8x16xf32>
    %c4_30 = arith.constant 4 : index
    %c0_31 = arith.constant 0 : index
    %c0_32 = arith.constant 0 : index
    %26 = vector.load %arg3[%c4_30, %c0_31, %c0_32] : memref<9x8x16xf32, #tpu.memory_space<vmem>>, vector<1x8x16xf32>
    %27 = vector.shape_cast %26 : vector<1x8x16xf32> to vector<8x16xf32>
    %c5_33 = arith.constant 5 : index
    %c0_34 = arith.constant 0 : index
    %c0_35 = arith.constant 0 : index
    %28 = vector.load %arg3[%c5_33, %c0_34, %c0_35] : memref<9x8x16xf32, #tpu.memory_space<vmem>>, vector<1x8x16xf32>
    %29 = vector.shape_cast %28 : vector<1x8x16xf32> to vector<8x16xf32>
    %c6_36 = arith.constant 6 : index
    %c0_37 = arith.constant 0 : index
    %c0_38 = arith.constant 0 : index
    %30 = vector.load %arg3[%c6_36, %c0_37, %c0_38] : memref<9x8x16xf32, #tpu.memory_space<vmem>>, vector<1x8x16xf32>
    %31 = vector.shape_cast %30 : vector<1x8x16xf32> to vector<8x16xf32>
    %c7_39 = arith.constant 7 : index
    %c0_40 = arith.constant 0 : index
    %c0_41 = arith.constant 0 : index
    %32 = vector.load %arg3[%c7_39, %c0_40, %c0_41] : memref<9x8x16xf32, #tpu.memory_space<vmem>>, vector<1x8x16xf32>
    %33 = vector.shape_cast %32 : vector<1x8x16xf32> to vector<8x16xf32>
    %c8_42 = arith.constant 8 : index
    %c0_43 = arith.constant 0 : index
    %c0_44 = arith.constant 0 : index
    %34 = vector.load %arg3[%c8_42, %c0_43, %c0_44] : memref<9x8x16xf32, #tpu.memory_space<vmem>>, vector<1x8x16xf32>
    %35 = vector.shape_cast %34 : vector<1x8x16xf32> to vector<8x16xf32>
    %cst = arith.constant 0.000000e+00 : f32
    %36 = vector.broadcast %cst : f32 to vector<16x384xf32>
    %cst_45 = arith.constant 0.000000e+00 : f32
    %37 = vector.broadcast %cst_45 : f32 to vector<8x384xf32>
    %c0_46 = arith.constant 0 : index
    %c0_47 = arith.constant 0 : index
    %c0_48 = arith.constant 0 : index
    %38 = vector.load %arg1[%c0_46, %c0_47, %c0_48] : memref<1x16x512xf32, #tpu.memory_space<vmem>>, vector<1x16x384xf32>
    %39 = vector.shape_cast %38 : vector<1x16x384xf32> to vector<16x384xf32>
    %cst_49 = arith.constant dense<0.000000e+00> : vector<16x384xf32>
    %40 = tpu.matmul %1, %39, %cst_49 {dimension_numbers = #tpu.dot_dimension_numbers<[1], [0], [0], [1], [0, 0, 1, 1], [], []>} : vector<16x16xf32>, vector<16x384xf32>, vector<16x384xf32> -> vector<16x384xf32>
    %41 = arith.addf %36, %40 : vector<16x384xf32>
    %42 = arith.mulf %39, %39 : vector<16x384xf32>
    %cst_50 = arith.constant dense<0.000000e+00> : vector<8x384xf32>
    %43 = tpu.matmul %19, %42, %cst_50 {dimension_numbers = #tpu.dot_dimension_numbers<[1], [0], [0], [1], [0, 0, 1, 1], [], []>} : vector<8x16xf32>, vector<16x384xf32>, vector<8x384xf32> -> vector<8x384xf32>
    %44 = arith.addf %37, %43 : vector<8x384xf32>
    %c0_51 = arith.constant 0 : index
    %c0_52 = arith.constant 0 : index
    %c1_53 = arith.constant 1 : index
    %45 = vector.load %arg1[%c0_51, %c0_52, %c1_53] : memref<1x16x512xf32, #tpu.memory_space<vmem>>, vector<1x16x384xf32>
    %46 = vector.shape_cast %45 : vector<1x16x384xf32> to vector<16x384xf32>
    %cst_54 = arith.constant dense<0.000000e+00> : vector<16x384xf32>
    %47 = tpu.matmul %3, %46, %cst_54 {dimension_numbers = #tpu.dot_dimension_numbers<[1], [0], [0], [1], [0, 0, 1, 1], [], []>} : vector<16x16xf32>, vector<16x384xf32>, vector<16x384xf32> -> vector<16x384xf32>
    %48 = arith.addf %41, %47 : vector<16x384xf32>
    %49 = arith.mulf %46, %46 : vector<16x384xf32>
    %cst_55 = arith.constant dense<0.000000e+00> : vector<8x384xf32>
    %50 = tpu.matmul %21, %49, %cst_55 {dimension_numbers = #tpu.dot_dimension_numbers<[1], [0], [0], [1], [0, 0, 1, 1], [], []>} : vector<8x16xf32>, vector<16x384xf32>, vector<8x384xf32> -> vector<8x384xf32>
    %51 = arith.addf %44, %50 : vector<8x384xf32>
    %c0_56 = arith.constant 0 : index
    %c0_57 = arith.constant 0 : index
    %c2_58 = arith.constant 2 : index
    %52 = vector.load %arg1[%c0_56, %c0_57, %c2_58] : memref<1x16x512xf32, #tpu.memory_space<vmem>>, vector<1x16x384xf32>
    %53 = vector.shape_cast %52 : vector<1x16x384xf32> to vector<16x384xf32>
    %cst_59 = arith.constant dense<0.000000e+00> : vector<16x384xf32>
    %54 = tpu.matmul %5, %53, %cst_59 {dimension_numbers = #tpu.dot_dimension_numbers<[1], [0], [0], [1], [0, 0, 1, 1], [], []>} : vector<16x16xf32>, vector<16x384xf32>, vector<16x384xf32> -> vector<16x384xf32>
    %55 = arith.addf %48, %54 : vector<16x384xf32>
    %56 = arith.mulf %53, %53 : vector<16x384xf32>
    %cst_60 = arith.constant dense<0.000000e+00> : vector<8x384xf32>
    %57 = tpu.matmul %23, %56, %cst_60 {dimension_numbers = #tpu.dot_dimension_numbers<[1], [0], [0], [1], [0, 0, 1, 1], [], []>} : vector<8x16xf32>, vector<16x384xf32>, vector<8x384xf32> -> vector<8x384xf32>
    %58 = arith.addf %51, %57 : vector<8x384xf32>
    %c0_61 = arith.constant 0 : index
    %c0_62 = arith.constant 0 : index
    %c18 = arith.constant 18 : index
    %59 = vector.load %arg1[%c0_61, %c0_62, %c18] : memref<1x16x512xf32, #tpu.memory_space<vmem>>, vector<1x16x384xf32>
    %60 = vector.shape_cast %59 : vector<1x16x384xf32> to vector<16x384xf32>
    %cst_63 = arith.constant dense<0.000000e+00> : vector<16x384xf32>
    %61 = tpu.matmul %7, %60, %cst_63 {dimension_numbers = #tpu.dot_dimension_numbers<[1], [0], [0], [1], [0, 0, 1, 1], [], []>} : vector<16x16xf32>, vector<16x384xf32>, vector<16x384xf32> -> vector<16x384xf32>
    %62 = arith.addf %55, %61 : vector<16x384xf32>
    %63 = arith.mulf %60, %60 : vector<16x384xf32>
    %cst_64 = arith.constant dense<0.000000e+00> : vector<8x384xf32>
    %64 = tpu.matmul %25, %63, %cst_64 {dimension_numbers = #tpu.dot_dimension_numbers<[1], [0], [0], [1], [0, 0, 1, 1], [], []>} : vector<8x16xf32>, vector<16x384xf32>, vector<8x384xf32> -> vector<8x384xf32>
    %65 = arith.addf %58, %64 : vector<8x384xf32>
    %c0_65 = arith.constant 0 : index
    %c0_66 = arith.constant 0 : index
    %c19 = arith.constant 19 : index
    %66 = vector.load %arg1[%c0_65, %c0_66, %c19] : memref<1x16x512xf32, #tpu.memory_space<vmem>>, vector<1x16x384xf32>
    %67 = vector.shape_cast %66 : vector<1x16x384xf32> to vector<16x384xf32>
    %cst_67 = arith.constant dense<0.000000e+00> : vector<16x384xf32>
    %68 = tpu.matmul %9, %67, %cst_67 {dimension_numbers = #tpu.dot_dimension_numbers<[1], [0], [0], [1], [0, 0, 1, 1], [], []>} : vector<16x16xf32>, vector<16x384xf32>, vector<16x384xf32> -> vector<16x384xf32>
    %69 = arith.addf %62, %68 : vector<16x384xf32>
    %70 = arith.mulf %67, %67 : vector<16x384xf32>
    %cst_68 = arith.constant dense<0.000000e+00> : vector<8x384xf32>
    %71 = tpu.matmul %27, %70, %cst_68 {dimension_numbers = #tpu.dot_dimension_numbers<[1], [0], [0], [1], [0, 0, 1, 1], [], []>} : vector<8x16xf32>, vector<16x384xf32>, vector<8x384xf32> -> vector<8x384xf32>
    %72 = arith.addf %65, %71 : vector<8x384xf32>
    %c0_69 = arith.constant 0 : index
    %c0_70 = arith.constant 0 : index
    %c20 = arith.constant 20 : index
    %73 = vector.load %arg1[%c0_69, %c0_70, %c20] : memref<1x16x512xf32, #tpu.memory_space<vmem>>, vector<1x16x384xf32>
    %74 = vector.shape_cast %73 : vector<1x16x384xf32> to vector<16x384xf32>
    %cst_71 = arith.constant dense<0.000000e+00> : vector<16x384xf32>
    %75 = tpu.matmul %11, %74, %cst_71 {dimension_numbers = #tpu.dot_dimension_numbers<[1], [0], [0], [1], [0, 0, 1, 1], [], []>} : vector<16x16xf32>, vector<16x384xf32>, vector<16x384xf32> -> vector<16x384xf32>
    %76 = arith.addf %69, %75 : vector<16x384xf32>
    %77 = arith.mulf %74, %74 : vector<16x384xf32>
    %cst_72 = arith.constant dense<0.000000e+00> : vector<8x384xf32>
    %78 = tpu.matmul %29, %77, %cst_72 {dimension_numbers = #tpu.dot_dimension_numbers<[1], [0], [0], [1], [0, 0, 1, 1], [], []>} : vector<8x16xf32>, vector<16x384xf32>, vector<8x384xf32> -> vector<8x384xf32>
    %79 = arith.addf %72, %78 : vector<8x384xf32>
    %c0_73 = arith.constant 0 : index
    %c0_74 = arith.constant 0 : index
    %c36 = arith.constant 36 : index
    %80 = vector.load %arg1[%c0_73, %c0_74, %c36] : memref<1x16x512xf32, #tpu.memory_space<vmem>>, vector<1x16x384xf32>
    %81 = vector.shape_cast %80 : vector<1x16x384xf32> to vector<16x384xf32>
    %cst_75 = arith.constant dense<0.000000e+00> : vector<16x384xf32>
    %82 = tpu.matmul %13, %81, %cst_75 {dimension_numbers = #tpu.dot_dimension_numbers<[1], [0], [0], [1], [0, 0, 1, 1], [], []>} : vector<16x16xf32>, vector<16x384xf32>, vector<16x384xf32> -> vector<16x384xf32>
    %83 = arith.addf %76, %82 : vector<16x384xf32>
    %84 = arith.mulf %81, %81 : vector<16x384xf32>
    %cst_76 = arith.constant dense<0.000000e+00> : vector<8x384xf32>
    %85 = tpu.matmul %31, %84, %cst_76 {dimension_numbers = #tpu.dot_dimension_numbers<[1], [0], [0], [1], [0, 0, 1, 1], [], []>} : vector<8x16xf32>, vector<16x384xf32>, vector<8x384xf32> -> vector<8x384xf32>
    %86 = arith.addf %79, %85 : vector<8x384xf32>
    %c0_77 = arith.constant 0 : index
    %c0_78 = arith.constant 0 : index
    %c37 = arith.constant 37 : index
    %87 = vector.load %arg1[%c0_77, %c0_78, %c37] : memref<1x16x512xf32, #tpu.memory_space<vmem>>, vector<1x16x384xf32>
    %88 = vector.shape_cast %87 : vector<1x16x384xf32> to vector<16x384xf32>
    %cst_79 = arith.constant dense<0.000000e+00> : vector<16x384xf32>
    %89 = tpu.matmul %15, %88, %cst_79 {dimension_numbers = #tpu.dot_dimension_numbers<[1], [0], [0], [1], [0, 0, 1, 1], [], []>} : vector<16x16xf32>, vector<16x384xf32>, vector<16x384xf32> -> vector<16x384xf32>
    %90 = arith.addf %83, %89 : vector<16x384xf32>
    %91 = arith.mulf %88, %88 : vector<16x384xf32>
    %cst_80 = arith.constant dense<0.000000e+00> : vector<8x384xf32>
    %92 = tpu.matmul %33, %91, %cst_80 {dimension_numbers = #tpu.dot_dimension_numbers<[1], [0], [0], [1], [0, 0, 1, 1], [], []>} : vector<8x16xf32>, vector<16x384xf32>, vector<8x384xf32> -> vector<8x384xf32>
    %93 = arith.addf %86, %92 : vector<8x384xf32>
    %c0_81 = arith.constant 0 : index
    %c0_82 = arith.constant 0 : index
    %c38 = arith.constant 38 : index
    %94 = vector.load %arg1[%c0_81, %c0_82, %c38] : memref<1x16x512xf32, #tpu.memory_space<vmem>>, vector<1x16x384xf32>
    %95 = vector.shape_cast %94 : vector<1x16x384xf32> to vector<16x384xf32>
    %cst_83 = arith.constant dense<0.000000e+00> : vector<16x384xf32>
    %96 = tpu.matmul %17, %95, %cst_83 {dimension_numbers = #tpu.dot_dimension_numbers<[1], [0], [0], [1], [0, 0, 1, 1], [], []>} : vector<16x16xf32>, vector<16x384xf32>, vector<16x384xf32> -> vector<16x384xf32>
    %97 = arith.addf %90, %96 : vector<16x384xf32>
    %98 = arith.mulf %95, %95 : vector<16x384xf32>
    %cst_84 = arith.constant dense<0.000000e+00> : vector<8x384xf32>
    %99 = tpu.matmul %35, %98, %cst_84 {dimension_numbers = #tpu.dot_dimension_numbers<[1], [0], [0], [1], [0, 0, 1, 1], [], []>} : vector<8x16xf32>, vector<16x384xf32>, vector<8x384xf32> -> vector<8x384xf32>
    %100 = arith.addf %93, %99 : vector<8x384xf32>
    %101 = vector.extract_strided_slice %97 {offsets = [0, 0], sizes = [8, 384], strides = [1, 1]} : vector<16x384xf32> to vector<8x384xf32>
    %102 = vector.extract_strided_slice %97 {offsets = [8, 0], sizes = [8, 384], strides = [1, 1]} : vector<16x384xf32> to vector<8x384xf32>
    %103 = arith.addf %102, %100 : vector<8x384xf32>
    %cst_85 = arith.constant 9.99999996E-13 : f32
    %104 = vector.broadcast %cst_85 : f32 to vector<8x384xf32>
    %105 = arith.addf %103, %104 : vector<8x384xf32>
    %106 = math.rsqrt %105 : vector<8x384xf32>
    %cst_86 = arith.constant 5.000000e-01 : f32
    %107 = vector.broadcast %cst_86 : f32 to vector<8x384xf32>
    %108 = arith.mulf %107, %105 : vector<8x384xf32>
    %109 = arith.mulf %108, %106 : vector<8x384xf32>
    %110 = arith.mulf %109, %106 : vector<8x384xf32>
    %cst_87 = arith.constant 1.500000e+00 : f32
    %111 = vector.broadcast %cst_87 : f32 to vector<8x384xf32>
    %112 = arith.subf %111, %110 : vector<8x384xf32>
    %113 = arith.mulf %106, %112 : vector<8x384xf32>
    %114 = arith.mulf %105, %113 : vector<8x384xf32>
    %115 = arith.mulf %101, %113 : vector<8x384xf32>
    %cst_88 = arith.constant 0.707106769 : f32
    %116 = vector.broadcast %cst_88 : f32 to vector<8x384xf32>
    %117 = arith.mulf %115, %116 : vector<8x384xf32>
    %cst_89 = arith.constant 0.000000e+00 : f32
    %118 = vector.broadcast %cst_89 : f32 to vector<8x384xf32>
    %119 = arith.cmpf oge, %117, %118 : vector<8x384xf32>
    %cst_90 = arith.constant 1.000000e+00 : f32
    %cst_91 = arith.constant -1.000000e+00 : f32
    %120 = vector.broadcast %cst_90 : f32 to vector<8x384xf32>
    %121 = vector.broadcast %cst_91 : f32 to vector<8x384xf32>
    %122 = arith.select %119, %120, %121 : vector<8x384xi1>, vector<8x384xf32>
    %123 = math.absf %117 : vector<8x384xf32>
    %cst_92 = arith.constant 0.327591091 : f32
    %124 = vector.broadcast %cst_92 : f32 to vector<8x384xf32>
    %125 = arith.mulf %124, %123 : vector<8x384xf32>
    %cst_93 = arith.constant 1.000000e+00 : f32
    %126 = vector.broadcast %cst_93 : f32 to vector<8x384xf32>
    %127 = arith.addf %126, %125 : vector<8x384xf32>
    %128 = tpu.reciprocal %127 {approx = true} : vector<8x384xf32> -> vector<8x384xf32>
    %129 = arith.mulf %127, %128 : vector<8x384xf32>
    %cst_94 = arith.constant 2.000000e+00 : f32
    %130 = vector.broadcast %cst_94 : f32 to vector<8x384xf32>
    %131 = arith.subf %130, %129 : vector<8x384xf32>
    %132 = arith.mulf %128, %131 : vector<8x384xf32>
    %cst_95 = arith.constant -5.000000e-01 : f32
    %133 = vector.broadcast %cst_95 : f32 to vector<8x384xf32>
    %134 = arith.mulf %133, %115 : vector<8x384xf32>
    %135 = arith.mulf %134, %115 : vector<8x384xf32>
    %136 = math.exp %135 : vector<8x384xf32>
    %cst_96 = arith.constant 1.06140542 : f32
    %137 = vector.broadcast %cst_96 : f32 to vector<8x384xf32>
    %138 = arith.mulf %132, %137 : vector<8x384xf32>
    %cst_97 = arith.constant -1.45315206 : f32
    %139 = vector.broadcast %cst_97 : f32 to vector<8x384xf32>
    %140 = arith.addf %139, %138 : vector<8x384xf32>
    %141 = arith.mulf %132, %140 : vector<8x384xf32>
    %cst_98 = arith.constant 1.42141378 : f32
    %142 = vector.broadcast %cst_98 : f32 to vector<8x384xf32>
    %143 = arith.addf %142, %141 : vector<8x384xf32>
    %144 = arith.mulf %132, %143 : vector<8x384xf32>
    %cst_99 = arith.constant -0.284496725 : f32
    %145 = vector.broadcast %cst_99 : f32 to vector<8x384xf32>
    %146 = arith.addf %145, %144 : vector<8x384xf32>
    %147 = arith.mulf %132, %146 : vector<8x384xf32>
    %cst_100 = arith.constant 0.254829586 : f32
    %148 = vector.broadcast %cst_100 : f32 to vector<8x384xf32>
    %149 = arith.addf %148, %147 : vector<8x384xf32>
    %150 = arith.mulf %132, %149 : vector<8x384xf32>
    %151 = arith.mulf %150, %136 : vector<8x384xf32>
    %cst_101 = arith.constant 1.000000e+00 : f32
    %152 = vector.broadcast %cst_101 : f32 to vector<8x384xf32>
    %153 = arith.subf %152, %151 : vector<8x384xf32>
    %154 = arith.mulf %122, %153 : vector<8x384xf32>
    %cst_102 = arith.constant 1.000000e+00 : f32
    %155 = vector.broadcast %cst_102 : f32 to vector<8x384xf32>
    %156 = arith.addf %155, %154 : vector<8x384xf32>
    %cst_103 = arith.constant 5.000000e-01 : f32
    %157 = vector.broadcast %cst_103 : f32 to vector<8x384xf32>
    %158 = arith.mulf %157, %156 : vector<8x384xf32>
    %cst_104 = arith.constant 0.398942292 : f32
    %159 = vector.broadcast %cst_104 : f32 to vector<8x384xf32>
    %160 = arith.mulf %159, %136 : vector<8x384xf32>
    %161 = arith.mulf %101, %158 : vector<8x384xf32>
    %162 = arith.mulf %114, %160 : vector<8x384xf32>
    %163 = arith.addf %161, %162 : vector<8x384xf32>
    %164 = arith.mulf %101, %101 : vector<8x384xf32>
    %165 = arith.addf %105, %164 : vector<8x384xf32>
    %166 = arith.mulf %165, %158 : vector<8x384xf32>
    %167 = arith.mulf %101, %114 : vector<8x384xf32>
    %168 = arith.mulf %167, %160 : vector<8x384xf32>
    %169 = arith.addf %166, %168 : vector<8x384xf32>
    %170 = arith.mulf %163, %163 : vector<8x384xf32>
    %171 = arith.subf %169, %170 : vector<8x384xf32>
    %cst_105 = arith.constant 0.000000e+00 : f32
    %172 = vector.broadcast %cst_105 : f32 to vector<8x384xf32>
    %173 = arith.maximumf %171, %172 : vector<8x384xf32>
    %c0_106 = arith.constant 0 : index
    %c0_107 = arith.constant 0 : index
    %c0_108 = arith.constant 0 : index
    %174 = vector.load %arg4[%c0_106, %c0_107, %c0_108] : memref<1x16x384xf32, #tpu.memory_space<vmem>>, vector<1x8x384xf32>
    %175 = vector.shape_cast %174 : vector<1x8x384xf32> to vector<8x384xf32>
    %176 = vector.shape_cast %163 : vector<8x384xf32> to vector<1x8x384xf32>
    tpu.vector_store %arg4[%c0_106, %c0_107, %c0_108], %176 {strides = array<i32>} : memref<1x16x384xf32, #tpu.memory_space<vmem>>, vector<1x8x384xf32>,
    %c0_109 = arith.constant 0 : index
    %c8_110 = arith.constant 8 : index
    %c0_111 = arith.constant 0 : index
    %177 = vector.load %arg4[%c0_109, %c8_110, %c0_111] : memref<1x16x384xf32, #tpu.memory_space<vmem>>, vector<1x8x384xf32>
    %178 = vector.shape_cast %177 : vector<1x8x384xf32> to vector<8x384xf32>
    %179 = vector.shape_cast %173 : vector<8x384xf32> to vector<1x8x384xf32>
    tpu.vector_store %arg4[%c0_109, %c8_110, %c0_111], %179 {strides = array<i32>} : memref<1x16x384xf32, #tpu.memory_space<vmem>>, vector<1x8x384xf32>,
    return
  }
  func.func @transform_0(%arg0: i32) -> (i32, i32, i32) {
    %c0_i32 = arith.constant 0 : i32
    %c0_i32_0 = arith.constant 0 : i32
    %c0_i32_1 = arith.constant 0 : i32
    return %arg0, %c0_i32, %c0_i32_0 : i32, i32, i32
  }
  func.func @transform_1(%arg0: i32) -> (i32, i32, i32) {
    %c0_i32 = arith.constant 0 : i32
    %c0_i32_0 = arith.constant 0 : i32
    %c0_i32_1 = arith.constant 0 : i32
    %c0_i32_2 = arith.constant 0 : i32
    return %c0_i32, %c0_i32_0, %c0_i32_1 : i32, i32, i32
  }
  func.func @transform_2(%arg0: i32) -> (i32, i32, i32) {
    %c0_i32 = arith.constant 0 : i32
    %c0_i32_0 = arith.constant 0 : i32
    %c0_i32_1 = arith.constant 0 : i32
    %c0_i32_2 = arith.constant 0 : i32
    return %c0_i32, %c0_i32_0, %c0_i32_1 : i32, i32, i32
  }
  func.func @transform_3(%arg0: i32) -> (i32, i32, i32) {
    %c0_i32 = arith.constant 0 : i32
    %c0_i32_0 = arith.constant 0 : i32
    %c0_i32_1 = arith.constant 0 : i32
    return %arg0, %c0_i32, %c0_i32_0 : i32, i32, i32
  }
}

</mosaic_0001>

<llo_original>
// kernel: tpu_custom_call.1
$region0: #{tpu_custom_call.1}
  #allocation0 [shape = 'u32[]', space=smem, size = 0x4, offset = 0x4, fixed_abs, tag = 'smem constant byte address 0x4 - core index']
  #allocation1 [shape = 'u32[72,128]{1,0:T(1,128)}', space=vmem, size = 0x9000, scoped, tag = 'internal scratch']
  %s0 = inlined_call_operand.hbm [shape: f32[2,16,512], index: 0, kind: input, shape index: {}]
  %s1 = inlined_call_operand.hbm [shape: f32[9,16,16], index: 1, kind: input, shape index: {}]
  %s2 = inlined_call_operand.hbm [shape: f32[9,8,16], index: 2, kind: input, shape index: {}]
  %s3 = inlined_call_operand.hbm [shape: f32[2,16,384], index: 3, kind: output, shape index: {}]
  %s4 = sld [smem:[#allocation0]]
  $region57: #{tpu_custom_call.1} parent=0
    _
  %s6 = ssub.s32 1, %s4
  %s7 = scalar_select 0, %s6, %s4
  $region1: #{tpu_custom_call.1} parent=0
    #allocation2 [shape = 'u8[65536]{0}', space=vmem, size = 0x10000, scoped, tag = 'input window, operand 0']
    #allocation3 [shape = 's32[2]{0}', space=sflag, size = 0x8, scoped, tag = 'scoped memory for tpu_custom_call.1']
    #allocation4 [shape = 's32[2]{0}', space=sflag, size = 0x8, scoped, tag = 'scoped memory for tpu_custom_call.1']
    #allocation5 [shape = 'u8[73728]{0}', space=vmem, size = 0x12000, scoped, tag = 'input window, operand 1, single buffered']
    #allocation6 [shape = 's32[1]{0}', space=sflag, size = 0x4, scoped, tag = 'scoped memory for tpu_custom_call.1']
    #allocation7 [shape = 'u8[36864]{0}', space=vmem, size = 0x9000, scoped, tag = 'input window, operand 2, single buffered']
    #allocation8 [shape = 'u8[49152]{0}', space=vmem, size = 0xc000, scoped, tag = 'output window, operand 0']
    %8 = vsyncpa [#allocation3], 0
    %s9 = scalar_lea.sflag [#allocation3], 1
    %10 = vsyncpa %s9, 0
    %11 = vsyncpa [#allocation6], 0
    %12 = vsyncpa [#allocation4], 0
    %s13 = scalar_lea.sflag [#allocation4], 1
    %14 = vsyncpa %s13, 0
    loop: start=0, step=1, limit=4
    $region2: #{tpu_custom_call.1} parent=1 // loop_pre_header
      _
    $region3: #{tpu_custom_call.1} parent=1 // loop_header
      %s16 = sphi 0, %s20
      %p17 = scmp.ge.s32.totalorder %s16, 4
      %s26 = sphi 0, %s28
      %s29 = sphi 0, %s26
      %s30 = sphi 0, %s29
      %s46 = sphi 0, %s30
      %s50 = sphi 0, %s50
      %s52 = sphi 0, %s50
      %s53 = sphi 0, %s52
      %s67 = sphi 0, %s53
      %s71 = sphi 0, %s71
      %s73 = sphi 0, %s71
      %s74 = sphi 0, %s73
      %s88 = sphi 0, %s74
      %s94 = sphi 0, %s96
      %s97 = sphi 0, %s94
      %s98 = sphi 0, %s97
      %s114 = sphi 0, %s98
    $region4: #{tpu_custom_call.1} parent=1 // loop_header_branch
      %19 = sbr.rel (%p17) target = $region8
    $region5: #{tpu_custom_call.1} parent=1 // loop_body
      %s21 = ssub.s32 %s16, 1
      %s22 = ssub.s32 %s16, 2
      %s23 = sadd.s32 %s16, 1
      %s24 = ssub.s32 %s16, %s23
      %p25 = scmp.eq.s32.totalorder %s24, 0
      %s27 = sadd.s32 %s26, 1
      %s28 = scalar_select %p25, %s26, %s27
      %p31 = pneg %p25
      %p32 = scmp.eq.s32.totalorder %s16, 1
      %p33 = por %p31, %p32
      %p34 = scmp.ne.s32.totalorder %s26, %s29
      %p35 = scmp.eq.s32.totalorder %s16, 0
      %p36 = por %p34, %p35
      %p37 = scmp.ne.s32.totalorder %s26, %s29
      %p38 = scmp.eq.s32.totalorder %s21, 1
      %p39 = por %p37, %p38
      %p40 = scmp.ne.s32.totalorder %s29, %s30
      %p41 = scmp.eq.s32.totalorder %s21, 0
      %p42 = por %p40, %p41
      %p43 = scmp.ne.s32.totalorder %s29, %s30
      %p44 = scmp.eq.s32.totalorder %s22, 1
      %p45 = por %p43, %p44
      %p47 = scmp.ne.s32.totalorder %s30, %s46
      %p48 = scmp.eq.s32.totalorder %s22, 0
      %p49 = por %p47, %p48
      %s51 = sadd.s32 %s50, 1
      %p54 = scmp.eq.s32.totalorder %s16, 1
      %p55 = scmp.ne.s32.totalorder %s50, %s52
      %p56 = scmp.eq.s32.totalorder %s16, 0
      %p57 = por %p55, %p56
      %p58 = scmp.ne.s32.totalorder %s50, %s52
      %p59 = scmp.eq.s32.totalorder %s21, 1
      %p60 = por %p58, %p59
      %p61 = scmp.ne.s32.totalorder %s52, %s53
      %p62 = scmp.eq.s32.totalorder %s21, 0
      %p63 = por %p61, %p62
      %p64 = scmp.ne.s32.totalorder %s52, %s53
      %p65 = scmp.eq.s32.totalorder %s22, 1
      %p66 = por %p64, %p65
      %p68 = scmp.ne.s32.totalorder %s53, %s67
      %p69 = scmp.eq.s32.totalorder %s22, 0
      %p70 = por %p68, %p69
      %s72 = sadd.s32 %s71, 1
      %p75 = scmp.eq.s32.totalorder %s16, 1
      %p76 = scmp.ne.s32.totalorder %s71, %s73
      %p77 = scmp.eq.s32.totalorder %s16, 0
      %p78 = por %p76, %p77
      %p79 = scmp.ne.s32.totalorder %s71, %s73
      %p80 = scmp.eq.s32.totalorder %s21, 1
      %p81 = por %p79, %p80
      %p82 = scmp.ne.s32.totalorder %s73, %s74
      %p83 = scmp.eq.s32.totalorder %s21, 0
      %p84 = por %p82, %p83
      %p85 = scmp.ne.s32.totalorder %s73, %s74
      %p86 = scmp.eq.s32.totalorder %s22, 1
      %p87 = por %p85, %p86
      %p89 = scmp.ne.s32.totalorder %s74, %s88
      %p90 = scmp.eq.s32.totalorder %s22, 0
      %p91 = por %p89, %p90
      %s92 = ssub.s32 %s16, %s23
      %p93 = scmp.eq.s32.totalorder %s92, 0
      %s95 = sadd.s32 %s94, 1
      %s96 = scalar_select %p93, %s94, %s95
      %p99 = pneg %p93
      %p100 = scmp.eq.s32.totalorder %s16, 1
      %p101 = por %p99, %p100
      %p102 = scmp.ne.s32.totalorder %s94, %s97
      %p103 = scmp.eq.s32.totalorder %s16, 0
      %p104 = por %p102, %p103
      %p105 = scmp.ne.s32.totalorder %s94, %s97
      %p106 = scmp.eq.s32.totalorder %s21, 1
      %p107 = por %p105, %p106
      %p108 = scmp.ne.s32.totalorder %s97, %s98
      %p109 = scmp.eq.s32.totalorder %s21, 0
      %p110 = por %p108, %p109
      %p111 = scmp.ne.s32.totalorder %s97, %s98
      %p112 = scmp.eq.s32.totalorder %s22, 1
      %p113 = por %p111, %p112
      %p115 = scmp.ne.s32.totalorder %s98, %s114
      %p116 = scmp.eq.s32.totalorder %s22, 0
      %p117 = por %p115, %p116
      %p118 = scmp.le.s32.totalorder 1, %s16
      %p119 = scmp.lt.s32.totalorder %s16, 3
      %p120 = pnand %p118, %p119
      %p121 = pneg %p120
      // Predicated region
      $region9: #{tpu_custom_call.1} parent=5 // pred_check
        _
      $region10: #{tpu_custom_call.1} parent=5 // pred_check_branch
        %123 = sbr.rel (%p120) target = $region12
      $region11: #{tpu_custom_call.1} parent=5 // pred_region
        %s124 = ssub.s32 %s16, 1
        // Predicated region
        $region13: #{tpu_custom_call.1} parent=11 // pred_check
          %p125 = pneg %p63
        $region14: #{tpu_custom_call.1} parent=11 // pred_check_branch
          %127 = sbr.rel (%p125) target = $region16
        $region15: #{tpu_custom_call.1} parent=11 // pred_region
          %129 = vsyncadd [#allocation6], 0
          %s130 = sshll.u32 %s1, 4
          %s131 = int_to_ptr.hbm [resolvable:$true] %s130
          %s132 = sshll.u32 [#allocation5], 4
          %s133 = int_to_ptr.vmem [resolvable:$true] %s132
          %138 = dma.hbm_to_vmem [thread:$0]  %s131, 2304, %s133, [#allocation6], 128, 128, 8
        $region16: #{tpu_custom_call.1} parent=11 // pred_fallthru
          _
        // Predicated region
        $region17: #{tpu_custom_call.1} parent=11 // pred_check
          %p139 = pneg %p84
        $region18: #{tpu_custom_call.1} parent=11 // pred_check_branch
          %141 = sbr.rel (%p139) target = $region20
        $region19: #{tpu_custom_call.1} parent=11 // pred_region
          %143 = vsyncadd [#allocation6], 0
          %s144 = sshll.u32 %s2, 4
          %s145 = int_to_ptr.hbm [resolvable:$true] %s144
          %s146 = sshll.u32 [#allocation7], 4
          %s147 = int_to_ptr.vmem [resolvable:$true] %s146
          %152 = dma.hbm_to_vmem [thread:$0]  %s145, 1152, %s147, [#allocation6], 128, 128, 8
        $region20: #{tpu_custom_call.1} parent=11 // pred_fallthru
          _
      $region12: #{tpu_custom_call.1} parent=5 // pred_fallthru
        _
      %p153 = scmp.lt.s32.totalorder %s16, 2
      // Predicated region
      $region21: #{tpu_custom_call.1} parent=5 // pred_check
        %p154 = pneg %p153
      $region22: #{tpu_custom_call.1} parent=5 // pred_check_branch
        %156 = sbr.rel (%p154) target = $region24
      $region23: #{tpu_custom_call.1} parent=5 // pred_region
        // Predicated region
        $region25: #{tpu_custom_call.1} parent=23 // pred_check
          %p157 = pneg %p36
        $region26: #{tpu_custom_call.1} parent=23 // pred_check_branch
          %159 = sbr.rel (%p157) target = $region28
        $region27: #{tpu_custom_call.1} parent=23 // pred_region
          %s160 = sand.u32 %s26, 1
          %s161 = scalar_lea.sflag [#allocation3], %s160
          %s162 = sand.u32 %s26, 1
          %s163 = smul.addr %s162, 64
          %s164 = scalar_lea.vmem [#allocation2], %s163
          %166 = vsyncadd %s161, 0
          %s167 = smul.addr %s16, 8
          %s168 = smul.addr %s167, 8
          %s169 = scalar_lea.hbm %s0, %s168
          %s170 = sshll.u32 %s169, 4
          %s171 = int_to_ptr.hbm [resolvable:$true] %s170
          %s172 = sshll.u32 %s164, 4
          %s173 = int_to_ptr.vmem [resolvable:$true] %s172
          %178 = dma.hbm_to_vmem [thread:$0]  %s171, 1024, %s173, %s161, 512, 512, 32
        $region28: #{tpu_custom_call.1} parent=23 // pred_fallthru
          _
      $region24: #{tpu_custom_call.1} parent=5 // pred_fallthru
        _
      %p179 = scmp.le.s32.totalorder 1, %s16
      %p180 = scmp.lt.s32.totalorder %s16, 3
      %p181 = pnand %p179, %p180
      %p182 = pneg %p181
      // Predicated region
      $region29: #{tpu_custom_call.1} parent=5 // pred_check
        _
      $region30: #{tpu_custom_call.1} parent=5 // pred_check_branch
        %184 = sbr.rel (%p181) target = $region32
      $region31: #{tpu_custom_call.1} parent=5 // pred_region
        %s185 = ssub.s32 %s16, 1
        %s186 = sand.u32 %s29, 1
        %s187 = scalar_lea.sflag [#allocation3], %s186
        %s188 = sand.u32 %s29, 1
        %s189 = smul.addr %s188, 64
        %s190 = scalar_lea.vmem [#allocation2], %s189
        // Predicated region
        $region33: #{tpu_custom_call.1} parent=31 // pred_check
          %p191 = pneg %p42
        $region34: #{tpu_custom_call.1} parent=31 // pred_check_branch
          %193 = sbr.rel (%p191) target = $region36
        $region35: #{tpu_custom_call.1} parent=31 // pred_region
          %195 = dma.done %s187, 1024
        $region36: #{tpu_custom_call.1} parent=31 // pred_fallthru
          _
        // Predicated region
        $region37: #{tpu_custom_call.1} parent=31 // pred_check
          %p196 = pneg %p63
        $region38: #{tpu_custom_call.1} parent=31 // pred_check_branch
          %198 = sbr.rel (%p196) target = $region40
        $region39: #{tpu_custom_call.1} parent=31 // pred_region
          %200 = dma.done [#allocation6], 2304
        $region40: #{tpu_custom_call.1} parent=31 // pred_fallthru
          _
        // Predicated region
        $region41: #{tpu_custom_call.1} parent=31 // pred_check
          %p201 = pneg %p84
        $region42: #{tpu_custom_call.1} parent=31 // pred_check_branch
          %203 = sbr.rel (%p201) target = $region44
        $region43: #{tpu_custom_call.1} parent=31 // pred_region
          %205 = dma.done [#allocation6], 1152
        $region44: #{tpu_custom_call.1} parent=31 // pred_fallthru
          _
        %s206 = sand.u32 %s29, 1
        %s207 = scalar_lea.sflag [#allocation3], %s206
        %s208 = sand.u32 %s29, 1
        %s209 = smul.addr %s208, 64
        %s210 = scalar_lea.vmem [#allocation2], %s209
        %p211 = pneg %p42
        %p212 = pneg %p39
        %p213 = pneg %p63
        %p214 = pneg %p60
        %p215 = pneg %p84
        %p216 = pneg %p81
        %p217 = pneg %p110
        %p218 = pneg %p107
        %s219 = sand.u32 %s97, 1
        %s220 = scalar_lea.sflag [#allocation4], %s219
        %s221 = sand.u32 %s97, 1
        %s222 = smul.addr %s221, 48
        %s223 = scalar_lea.vmem [#allocation8], %s222
        %v224 = vld [vmem:[#allocation5] sm:$0xff]
        %v225 = vld [vmem:[#allocation5 + $0x8] sm:$0xff]
        %s226 = scalar_lea.vmem [#allocation5], 16
        %v227 = vld [vmem:[%s226] sm:$0xff]
        %v228 = vld [vmem:[%s226 + $0x8] sm:$0xff]
        %s229 = scalar_lea.vmem [#allocation5], 32
        %v230 = vld [vmem:[%s229] sm:$0xff]
        %v231 = vld [vmem:[%s229 + $0x8] sm:$0xff]
        %s232 = scalar_lea.vmem [#allocation5], 48
        %v233 = vld [vmem:[%s232] sm:$0xff]
        %v234 = vld [vmem:[%s232 + $0x8] sm:$0xff]
        %s235 = scalar_lea.vmem [#allocation5], 64
        %v236 = vld [vmem:[%s235] sm:$0xff]
        %v237 = vld [vmem:[%s235 + $0x8] sm:$0xff]
        %s238 = scalar_lea.vmem [#allocation5], 80
        %v239 = vld [vmem:[%s238] sm:$0xff]
        %v240 = vld [vmem:[%s238 + $0x8] sm:$0xff]
        %s241 = scalar_lea.vmem [#allocation5], 96
        %v242 = vld [vmem:[%s241] sm:$0xff]
        %v243 = vld [vmem:[%s241 + $0x8] sm:$0xff]
        %s244 = scalar_lea.vmem [#allocation5], 112
        %v245 = vld [vmem:[%s244] sm:$0xff]
        %v246 = vld [vmem:[%s244 + $0x8] sm:$0xff]
        %s247 = scalar_lea.vmem [#allocation5], 128
        %v248 = vld [vmem:[%s247] sm:$0xff]
        %v249 = vld [vmem:[%s247 + $0x8] sm:$0xff]
        %v250 = vld [vmem:[#allocation7] sm:$0xff]
        %s251 = scalar_lea.vmem [#allocation7], 8
        %v252 = vld [vmem:[%s251] sm:$0xff]
        %s253 = scalar_lea.vmem [#allocation7], 16
        %v254 = vld [vmem:[%s253] sm:$0xff]
        %s255 = scalar_lea.vmem [#allocation7], 24
        %v256 = vld [vmem:[%s255] sm:$0xff]
        %s257 = scalar_lea.vmem [#allocation7], 32
        %v258 = vld [vmem:[%s257] sm:$0xff]
        %s259 = scalar_lea.vmem [#allocation7], 40
        %v260 = vld [vmem:[%s259] sm:$0xff]
        %s261 = scalar_lea.vmem [#allocation7], 48
        %v262 = vld [vmem:[%s261] sm:$0xff]
        %s263 = scalar_lea.vmem [#allocation7], 56
        %v264 = vld [vmem:[%s263] sm:$0xff]
        %s265 = scalar_lea.vmem [#allocation7], 64
        %v266 = vld [vmem:[%s265] sm:$0xff]
        %v267 = vld [vmem:[%s190] sm:$0xff]
        %v268 = vld [vmem:[%s190 + $0x8] sm:$0xff]
        %v269 = vld [vmem:[%s190 + $0x10] sm:$0xff]
        %v270 = vld [vmem:[%s190 + $0x20] sm:$0xff]
        %v271 = vld [vmem:[%s190 + $0x28] sm:$0xff]
        %v272 = vld [vmem:[%s190 + $0x30] sm:$0xff]
        %v273 = vmul.f32 %v267, %v267
        %v274 = vmul.f32 %v268, %v268
        %v275 = vmul.f32 %v269, %v269
        %v276 = vmul.f32 %v270, %v270
        %v277 = vmul.f32 %v271, %v271
        %v278 = vmul.f32 %v272, %v272
        %v279 = vld [vmem:[%s190] sm:$0xff]
        %v280 = vld [vmem:[%s190 + $0x8] sm:$0xff]
        %v281 = vld [vmem:[%s190 + $0x10] sm:$0xff]
        %v282 = vld [vmem:[%s190 + $0x18] sm:$0xff]
        %v283 = vld [vmem:[%s190 + $0x20] sm:$0xff]
        %v284 = vld [vmem:[%s190 + $0x28] sm:$0xff]
        %v285 = vld [vmem:[%s190 + $0x30] sm:$0xff]
        %v286 = vld [vmem:[%s190 + $0x38] sm:$0xff]
        %295 = vrot.lane.b32.xlu0 %v279, 127
        %v296 = vpop.permute.xlu0 %295
        %297 = vrot.lane.b32.xlu0 %v280, 127
        %v298 = vpop.permute.xlu0 %297
        %299 = vrot.lane.b32.xlu0 %v281, 127
        %v300 = vpop.permute.xlu0 %299
        %301 = vrot.lane.b32.xlu0 %v282, 127
        %v302 = vpop.permute.xlu0 %301
        %303 = vrot.lane.b32.xlu0 %v283, 127
        %v304 = vpop.permute.xlu0 %303
        %305 = vrot.lane.b32.xlu0 %v284, 127
        %v306 = vpop.permute.xlu0 %305
        %307 = vrot.lane.b32.xlu0 %v285, 127
        %v308 = vpop.permute.xlu0 %307
        %309 = vrot.lane.b32.xlu0 %v286, 127
        %v310 = vpop.permute.xlu0 %309
        %vm311 = vcmask 1039360
        %v312 = vsel %vm311, %v296, %v298
        %v313 = vsel %vm311, %v298, %v300
        %v314 = vsel %vm311, %v300, %v302
        %v315 = vsel %vm311, %v304, %v306
        %v316 = vsel %vm311, %v306, %v308
        %v317 = vsel %vm311, %v308, %v310
        %vm324 = vcmask 130048
        %v326 = vsel %vm324, %v227, 0
        %v329 = vsel %vm324, %v228, 0
        %331 = vmatpush.msra.mxu0 0.0
        %332 = vmatpush.msra.mxu0 0.0
        %333 = vmatpush.msra.mxu0 0.0
        %334 = vmatpush.msra.mxu0 0.0
        %335 = vmatpush.msra.mxu0 0.0
        %336 = vmatpush.msra.mxu0 0.0
        %337 = vmatpush.msra.mxu0 0.0
        %338 = vmatpush.msra.mxu0 0.0
        %339 = vmatpush.msra.mxu0 0.0
        %340 = vmatpush.msra.mxu0 0.0
        %341 = vmatpush.msra.mxu0 0.0
        %342 = vmatpush.msra.mxu0 0.0
        %343 = vmatpush.msra.mxu0 0.0
        %344 = vmatpush.msra.mxu0 0.0
        %345 = vmatpush.msra.mxu0 %v315
        %346 = vmatpush.msra.mxu0 %v312
        %347 = vmatmul.f32.gmra.mxu0 %v326
        %v348 = vpop.f32.mrf.mxu0
        %v349 = vadd.f32 0.0, %v348
        %350 = vmatmul.f32.gmra.mxu0 %v329
        %v351 = vpop.f32.mrf.mxu0
        %v352 = vadd.f32 0.0, %v351
        %353 = vdwg.mxu0
        %354 = vmatpush.msra.mxu0 0.0
        %355 = vmatpush.msra.mxu0 0.0
        %356 = vmatpush.msra.mxu0 0.0
        %357 = vmatpush.msra.mxu0 0.0
        %358 = vmatpush.msra.mxu0 0.0
        %359 = vmatpush.msra.mxu0 0.0
        %360 = vmatpush.msra.mxu0 0.0
        %361 = vmatpush.msra.mxu0 0.0
        %362 = vmatpush.msra.mxu0 0.0
        %363 = vmatpush.msra.mxu0 0.0
        %364 = vmatpush.msra.mxu0 0.0
        %365 = vmatpush.msra.mxu0 0.0
        %366 = vmatpush.msra.mxu0 0.0
        %367 = vmatpush.msra.mxu0 0.0
        %368 = vmatpush.msra.mxu0 %v316
        %369 = vmatpush.msra.mxu0 %v313
        %370 = vmatmul.f32.gmra.mxu0 %v326
        %v371 = vpop.f32.mrf.mxu0
        %v372 = vadd.f32 0.0, %v371
        %373 = vmatmul.f32.gmra.mxu0 %v329
        %v374 = vpop.f32.mrf.mxu0
        %v375 = vadd.f32 0.0, %v374
        %376 = vdwg.mxu0
        %377 = vmatpush.msra.mxu0 0.0
        %378 = vmatpush.msra.mxu0 0.0
        %379 = vmatpush.msra.mxu0 0.0
        %380 = vmatpush.msra.mxu0 0.0
        %381 = vmatpush.msra.mxu0 0.0
        %382 = vmatpush.msra.mxu0 0.0
        %383 = vmatpush.msra.mxu0 0.0
        %384 = vmatpush.msra.mxu0 0.0
        %385 = vmatpush.msra.mxu0 0.0
        %386 = vmatpush.msra.mxu0 0.0
        %387 = vmatpush.msra.mxu0 0.0
        %388 = vmatpush.msra.mxu0 0.0
        %389 = vmatpush.msra.mxu0 0.0
        %390 = vmatpush.msra.mxu0 0.0
        %391 = vmatpush.msra.mxu0 %v317
        %392 = vmatpush.msra.mxu0 %v314
        %393 = vmatmul.f32.gmra.mxu0 %v326
        %v394 = vpop.f32.mrf.mxu0
        %v395 = vadd.f32 0.0, %v394
        %396 = vmatmul.f32.gmra.mxu0 %v329
        %v397 = vpop.f32.mrf.mxu0
        %v398 = vadd.f32 0.0, %v397
        %399 = vdwg.mxu0
        %v401 = vsel %vm324, %v224, 0
        %v404 = vsel %vm324, %v225, 0
        %406 = vmatpush.msra.mxu0 0.0
        %407 = vmatpush.msra.mxu0 0.0
        %408 = vmatpush.msra.mxu0 0.0
        %409 = vmatpush.msra.mxu0 0.0
        %410 = vmatpush.msra.mxu0 0.0
        %411 = vmatpush.msra.mxu0 0.0
        %412 = vmatpush.msra.mxu0 0.0
        %413 = vmatpush.msra.mxu0 0.0
        %414 = vmatpush.msra.mxu0 0.0
        %415 = vmatpush.msra.mxu0 0.0
        %416 = vmatpush.msra.mxu0 0.0
        %417 = vmatpush.msra.mxu0 0.0
        %418 = vmatpush.msra.mxu0 0.0
        %419 = vmatpush.msra.mxu0 0.0
        %420 = vmatpush.msra.mxu0 %v270
        %421 = vmatpush.msra.mxu0 %v267
        %422 = vmatmul.f32.gmra.mxu0 %v401
        %v423 = vpop.f32.mrf.mxu0
        %v424 = vadd.f32 %v349, %v423
        %425 = vmatmul.f32.gmra.mxu0 %v404
        %v426 = vpop.f32.mrf.mxu0
        %v427 = vadd.f32 %v352, %v426
        %428 = vdwg.mxu0
        %429 = vmatpush.msra.mxu0 0.0
        %430 = vmatpush.msra.mxu0 0.0
        %431 = vmatpush.msra.mxu0 0.0
        %432 = vmatpush.msra.mxu0 0.0
        %433 = vmatpush.msra.mxu0 0.0
        %434 = vmatpush.msra.mxu0 0.0
        %435 = vmatpush.msra.mxu0 0.0
        %436 = vmatpush.msra.mxu0 0.0
        %437 = vmatpush.msra.mxu0 0.0
        %438 = vmatpush.msra.mxu0 0.0
        %439 = vmatpush.msra.mxu0 0.0
        %440 = vmatpush.msra.mxu0 0.0
        %441 = vmatpush.msra.mxu0 0.0
        %442 = vmatpush.msra.mxu0 0.0
        %443 = vmatpush.msra.mxu0 %v271
        %444 = vmatpush.msra.mxu0 %v268
        %445 = vmatmul.f32.gmra.mxu0 %v401
        %v446 = vpop.f32.mrf.mxu0
        %v447 = vadd.f32 %v372, %v446
        %448 = vmatmul.f32.gmra.mxu0 %v404
        %v449 = vpop.f32.mrf.mxu0
        %v450 = vadd.f32 %v375, %v449
        %451 = vdwg.mxu0
        %452 = vmatpush.msra.mxu0 0.0
        %453 = vmatpush.msra.mxu0 0.0
        %454 = vmatpush.msra.mxu0 0.0
        %455 = vmatpush.msra.mxu0 0.0
        %456 = vmatpush.msra.mxu0 0.0
        %457 = vmatpush.msra.mxu0 0.0
        %458 = vmatpush.msra.mxu0 0.0
        %459 = vmatpush.msra.mxu0 0.0
        %460 = vmatpush.msra.mxu0 0.0
        %461 = vmatpush.msra.mxu0 0.0
        %462 = vmatpush.msra.mxu0 0.0
        %463 = vmatpush.msra.mxu0 0.0
        %464 = vmatpush.msra.mxu0 0.0
        %465 = vmatpush.msra.mxu0 0.0
        %466 = vmatpush.msra.mxu0 %v272
        %467 = vmatpush.msra.mxu0 %v269
        %468 = vmatmul.f32.gmra.mxu0 %v401
        %v469 = vpop.f32.mrf.mxu0
        %v470 = vadd.f32 %v395, %v469
        %471 = vmatmul.f32.gmra.mxu0 %v404
        %v472 = vpop.f32.mrf.mxu0
        %v473 = vadd.f32 %v398, %v472
        %474 = vdwg.mxu0
        %v475 = vmul.f32 %v279, %v279
        %v476 = vmul.f32 %v280, %v280
        %v477 = vmul.f32 %v281, %v281
        %v478 = vmul.f32 %v282, %v282
        %v479 = vmul.f32 %v283, %v283
        %v480 = vmul.f32 %v284, %v284
        %v481 = vmul.f32 %v285, %v285
        %v482 = vmul.f32 %v286, %v286
        %491 = vrot.lane.b32.xlu0 %v475, 127
        %v492 = vpop.permute.xlu0 %491
        %493 = vrot.lane.b32.xlu0 %v476, 127
        %v494 = vpop.permute.xlu0 %493
        %495 = vrot.lane.b32.xlu0 %v477, 127
        %v496 = vpop.permute.xlu0 %495
        %497 = vrot.lane.b32.xlu0 %v478, 127
        %v498 = vpop.permute.xlu0 %497
        %499 = vrot.lane.b32.xlu0 %v479, 127
        %v500 = vpop.permute.xlu0 %499
        %501 = vrot.lane.b32.xlu0 %v480, 127
        %v502 = vpop.permute.xlu0 %501
        %503 = vrot.lane.b32.xlu0 %v481, 127
        %v504 = vpop.permute.xlu0 %503
        %505 = vrot.lane.b32.xlu0 %v482, 127
        %v506 = vpop.permute.xlu0 %505
        %v507 = vsel %vm311, %v492, %v494
        %v508 = vsel %vm311, %v494, %v496
        %v509 = vsel %vm311, %v496, %v498
        %v510 = vsel %vm311, %v500, %v502
        %v511 = vsel %vm311, %v502, %v504
        %v512 = vsel %vm311, %v504, %v506
        %v520 = vsel %vm324, %v252, 0
        %522 = vmatpush.msra.mxu0 0.0
        %523 = vmatpush.msra.mxu0 0.0
        %524 = vmatpush.msra.mxu0 0.0
        %525 = vmatpush.msra.mxu0 0.0
        %526 = vmatpush.msra.mxu0 0.0
        %527 = vmatpush.msra.mxu0 0.0
        %528 = vmatpush.msra.mxu0 0.0
        %529 = vmatpush.msra.mxu0 0.0
        %530 = vmatpush.msra.mxu0 0.0
        %531 = vmatpush.msra.mxu0 0.0
        %532 = vmatpush.msra.mxu0 0.0
        %533 = vmatpush.msra.mxu0 0.0
        %534 = vmatpush.msra.mxu0 0.0
        %535 = vmatpush.msra.mxu0 0.0
        %536 = vmatpush.msra.mxu0 %v510
        %537 = vmatpush.msra.mxu0 %v507
        %538 = vmatmul.f32.gmra.mxu0 %v520
        %v539 = vpop.f32.mrf.mxu0
        %v540 = vadd.f32 0.0, %v539
        %541 = vdwg.mxu0
        %542 = vmatpush.msra.mxu0 0.0
        %543 = vmatpush.msra.mxu0 0.0
        %544 = vmatpush.msra.mxu0 0.0
        %545 = vmatpush.msra.mxu0 0.0
        %546 = vmatpush.msra.mxu0 0.0
        %547 = vmatpush.msra.mxu0 0.0
        %548 = vmatpush.msra.mxu0 0.0
        %549 = vmatpush.msra.mxu0 0.0
        %550 = vmatpush.msra.mxu0 0.0
        %551 = vmatpush.msra.mxu0 0.0
        %552 = vmatpush.msra.mxu0 0.0
        %553 = vmatpush.msra.mxu0 0.0
        %554 = vmatpush.msra.mxu0 0.0
        %555 = vmatpush.msra.mxu0 0.0
        %556 = vmatpush.msra.mxu0 %v511
        %557 = vmatpush.msra.mxu0 %v508
        %558 = vmatmul.f32.gmra.mxu0 %v520
        %v559 = vpop.f32.mrf.mxu0
        %v560 = vadd.f32 0.0, %v559
        %561 = vdwg.mxu0
        %562 = vmatpush.msra.mxu0 0.0
        %563 = vmatpush.msra.mxu0 0.0
        %564 = vmatpush.msra.mxu0 0.0
        %565 = vmatpush.msra.mxu0 0.0
        %566 = vmatpush.msra.mxu0 0.0
        %567 = vmatpush.msra.mxu0 0.0
        %568 = vmatpush.msra.mxu0 0.0
        %569 = vmatpush.msra.mxu0 0.0
        %570 = vmatpush.msra.mxu0 0.0
        %571 = vmatpush.msra.mxu0 0.0
        %572 = vmatpush.msra.mxu0 0.0
        %573 = vmatpush.msra.mxu0 0.0
        %574 = vmatpush.msra.mxu0 0.0
        %575 = vmatpush.msra.mxu0 0.0
        %576 = vmatpush.msra.mxu0 %v512
        %577 = vmatpush.msra.mxu0 %v509
        %578 = vmatmul.f32.gmra.mxu0 %v520
        %v579 = vpop.f32.mrf.mxu0
        %v580 = vadd.f32 0.0, %v579
        %581 = vdwg.mxu0
        %v583 = vsel %vm324, %v250, 0
        %585 = vmatpush.msra.mxu0 0.0
        %586 = vmatpush.msra.mxu0 0.0
        %587 = vmatpush.msra.mxu0 0.0
        %588 = vmatpush.msra.mxu0 0.0
        %589 = vmatpush.msra.mxu0 0.0
        %590 = vmatpush.msra.mxu0 0.0
        %591 = vmatpush.msra.mxu0 0.0
        %592 = vmatpush.msra.mxu0 0.0
        %593 = vmatpush.msra.mxu0 0.0
        %594 = vmatpush.msra.mxu0 0.0
        %595 = vmatpush.msra.mxu0 0.0
        %596 = vmatpush.msra.mxu0 0.0
        %597 = vmatpush.msra.mxu0 0.0
        %598 = vmatpush.msra.mxu0 0.0
        %599 = vmatpush.msra.mxu0 %v276
        %600 = vmatpush.msra.mxu0 %v273
        %601 = vmatmul.f32.gmra.mxu0 %v583
        %v602 = vpop.f32.mrf.mxu0
        %v603 = vadd.f32 %v540, %v602
        %604 = vdwg.mxu0
        %605 = vmatpush.msra.mxu0 0.0
        %606 = vmatpush.msra.mxu0 0.0
        %607 = vmatpush.msra.mxu0 0.0
        %608 = vmatpush.msra.mxu0 0.0
        %609 = vmatpush.msra.mxu0 0.0
        %610 = vmatpush.msra.mxu0 0.0
        %611 = vmatpush.msra.mxu0 0.0
        %612 = vmatpush.msra.mxu0 0.0
        %613 = vmatpush.msra.mxu0 0.0
        %614 = vmatpush.msra.mxu0 0.0
        %615 = vmatpush.msra.mxu0 0.0
        %616 = vmatpush.msra.mxu0 0.0
        %617 = vmatpush.msra.mxu0 0.0
        %618 = vmatpush.msra.mxu0 0.0
        %619 = vmatpush.msra.mxu0 %v277
        %620 = vmatpush.msra.mxu0 %v274
        %621 = vmatmul.f32.gmra.mxu0 %v583
        %v622 = vpop.f32.mrf.mxu0
        %v623 = vadd.f32 %v560, %v622
        %624 = vdwg.mxu0
        %625 = vmatpush.msra.mxu0 0.0
        %626 = vmatpush.msra.mxu0 0.0
        %627 = vmatpush.msra.mxu0 0.0
        %628 = vmatpush.msra.mxu0 0.0
        %629 = vmatpush.msra.mxu0 0.0
        %630 = vmatpush.msra.mxu0 0.0
        %631 = vmatpush.msra.mxu0 0.0
        %632 = vmatpush.msra.mxu0 0.0
        %633 = vmatpush.msra.mxu0 0.0
        %634 = vmatpush.msra.mxu0 0.0
        %635 = vmatpush.msra.mxu0 0.0
        %636 = vmatpush.msra.mxu0 0.0
        %637 = vmatpush.msra.mxu0 0.0
        %638 = vmatpush.msra.mxu0 0.0
        %639 = vmatpush.msra.mxu0 %v278
        %640 = vmatpush.msra.mxu0 %v275
        %641 = vmatmul.f32.gmra.mxu0 %v583
        %v642 = vpop.f32.mrf.mxu0
        %v643 = vadd.f32 %v580, %v642
        %644 = vdwg.mxu0
        %645 = vrot.lane.b32.xlu0 %v279, 126
        %v646 = vpop.permute.xlu0 %645
        %647 = vrot.lane.b32.xlu0 %v280, 126
        %v648 = vpop.permute.xlu0 %647
        %649 = vrot.lane.b32.xlu0 %v281, 126
        %v650 = vpop.permute.xlu0 %649
        %651 = vrot.lane.b32.xlu0 %v282, 126
        %v652 = vpop.permute.xlu0 %651
        %653 = vrot.lane.b32.xlu0 %v283, 126
        %v654 = vpop.permute.xlu0 %653
        %655 = vrot.lane.b32.xlu0 %v284, 126
        %v656 = vpop.permute.xlu0 %655
        %657 = vrot.lane.b32.xlu0 %v285, 126
        %v658 = vpop.permute.xlu0 %657
        %659 = vrot.lane.b32.xlu0 %v286, 126
        %v660 = vpop.permute.xlu0 %659
        %vm661 = vcmask 1031168
        %v662 = vsel %vm661, %v646, %v648
        %v663 = vsel %vm661, %v648, %v650
        %v664 = vsel %vm661, %v650, %v652
        %v665 = vsel %vm661, %v654, %v656
        %v666 = vsel %vm661, %v656, %v658
        %v667 = vsel %vm661, %v658, %v660
        %v675 = vsel %vm324, %v230, 0
        %v678 = vsel %vm324, %v231, 0
        %680 = vmatpush.msra.mxu0 0.0
        %681 = vmatpush.msra.mxu0 0.0
        %682 = vmatpush.msra.mxu0 0.0
        %683 = vmatpush.msra.mxu0 0.0
        %684 = vmatpush.msra.mxu0 0.0
        %685 = vmatpush.msra.mxu0 0.0
        %686 = vmatpush.msra.mxu0 0.0
        %687 = vmatpush.msra.mxu0 0.0
        %688 = vmatpush.msra.mxu0 0.0
        %689 = vmatpush.msra.mxu0 0.0
        %690 = vmatpush.msra.mxu0 0.0
        %691 = vmatpush.msra.mxu0 0.0
        %692 = vmatpush.msra.mxu0 0.0
        %693 = vmatpush.msra.mxu0 0.0
        %694 = vmatpush.msra.mxu0 %v665
        %695 = vmatpush.msra.mxu0 %v662
        %696 = vmatmul.f32.gmra.mxu0 %v675
        %v697 = vpop.f32.mrf.mxu0
        %v698 = vadd.f32 0.0, %v697
        %699 = vmatmul.f32.gmra.mxu0 %v678
        %v700 = vpop.f32.mrf.mxu0
        %v701 = vadd.f32 0.0, %v700
        %702 = vdwg.mxu0
        %703 = vmatpush.msra.mxu0 0.0
        %704 = vmatpush.msra.mxu0 0.0
        %705 = vmatpush.msra.mxu0 0.0
        %706 = vmatpush.msra.mxu0 0.0
        %707 = vmatpush.msra.mxu0 0.0
        %708 = vmatpush.msra.mxu0 0.0
        %709 = vmatpush.msra.mxu0 0.0
        %710 = vmatpush.msra.mxu0 0.0
        %711 = vmatpush.msra.mxu0 0.0
        %712 = vmatpush.msra.mxu0 0.0
        %713 = vmatpush.msra.mxu0 0.0
        %714 = vmatpush.msra.mxu0 0.0
        %715 = vmatpush.msra.mxu0 0.0
        %716 = vmatpush.msra.mxu0 0.0
        %717 = vmatpush.msra.mxu0 %v666
        %718 = vmatpush.msra.mxu0 %v663
        %719 = vmatmul.f32.gmra.mxu0 %v675
        %v720 = vpop.f32.mrf.mxu0
        %v721 = vadd.f32 0.0, %v720
        %722 = vmatmul.f32.gmra.mxu0 %v678
        %v723 = vpop.f32.mrf.mxu0
        %v724 = vadd.f32 0.0, %v723
        %725 = vdwg.mxu0
        %726 = vmatpush.msra.mxu0 0.0
        %727 = vmatpush.msra.mxu0 0.0
        %728 = vmatpush.msra.mxu0 0.0
        %729 = vmatpush.msra.mxu0 0.0
        %730 = vmatpush.msra.mxu0 0.0
        %731 = vmatpush.msra.mxu0 0.0
        %732 = vmatpush.msra.mxu0 0.0
        %733 = vmatpush.msra.mxu0 0.0
        %734 = vmatpush.msra.mxu0 0.0
        %735 = vmatpush.msra.mxu0 0.0
        %736 = vmatpush.msra.mxu0 0.0
        %737 = vmatpush.msra.mxu0 0.0
        %738 = vmatpush.msra.mxu0 0.0
        %739 = vmatpush.msra.mxu0 0.0
        %740 = vmatpush.msra.mxu0 %v667
        %741 = vmatpush.msra.mxu0 %v664
        %742 = vmatmul.f32.gmra.mxu0 %v675
        %v743 = vpop.f32.mrf.mxu0
        %v744 = vadd.f32 0.0, %v743
        %745 = vmatmul.f32.gmra.mxu0 %v678
        %v746 = vpop.f32.mrf.mxu0
        %v747 = vadd.f32 0.0, %v746
        %748 = vdwg.mxu0
        %v749 = vadd.f32 %v424, %v698
        %v750 = vadd.f32 %v447, %v721
        %v751 = vadd.f32 %v470, %v744
        %v752 = vadd.f32 %v427, %v701
        %v753 = vadd.f32 %v450, %v724
        %v754 = vadd.f32 %v473, %v747
        %755 = vrot.lane.b32.xlu0 %v475, 126
        %v756 = vpop.permute.xlu0 %755
        %757 = vrot.lane.b32.xlu0 %v476, 126
        %v758 = vpop.permute.xlu0 %757
        %759 = vrot.lane.b32.xlu0 %v477, 126
        %v760 = vpop.permute.xlu0 %759
        %761 = vrot.lane.b32.xlu0 %v478, 126
        %v762 = vpop.permute.xlu0 %761
        %763 = vrot.lane.b32.xlu0 %v479, 126
        %v764 = vpop.permute.xlu0 %763
        %765 = vrot.lane.b32.xlu0 %v480, 126
        %v766 = vpop.permute.xlu0 %765
        %767 = vrot.lane.b32.xlu0 %v481, 126
        %v768 = vpop.permute.xlu0 %767
        %769 = vrot.lane.b32.xlu0 %v482, 126
        %v770 = vpop.permute.xlu0 %769
        %v771 = vsel %vm661, %v756, %v758
        %v772 = vsel %vm661, %v758, %v760
        %v773 = vsel %vm661, %v760, %v762
        %v774 = vsel %vm661, %v764, %v766
        %v775 = vsel %vm661, %v766, %v768
        %v776 = vsel %vm661, %v768, %v770
        %v784 = vsel %vm324, %v254, 0
        %786 = vmatpush.msra.mxu0 0.0
        %787 = vmatpush.msra.mxu0 0.0
        %788 = vmatpush.msra.mxu0 0.0
        %789 = vmatpush.msra.mxu0 0.0
        %790 = vmatpush.msra.mxu0 0.0
        %791 = vmatpush.msra.mxu0 0.0
        %792 = vmatpush.msra.mxu0 0.0
        %793 = vmatpush.msra.mxu0 0.0
        %794 = vmatpush.msra.mxu0 0.0
        %795 = vmatpush.msra.mxu0 0.0
        %796 = vmatpush.msra.mxu0 0.0
        %797 = vmatpush.msra.mxu0 0.0
        %798 = vmatpush.msra.mxu0 0.0
        %799 = vmatpush.msra.mxu0 0.0
        %800 = vmatpush.msra.mxu0 %v774
        %801 = vmatpush.msra.mxu0 %v771
        %802 = vmatmul.f32.gmra.mxu0 %v784
        %v803 = vpop.f32.mrf.mxu0
        %v804 = vadd.f32 0.0, %v803
        %805 = vdwg.mxu0
        %806 = vmatpush.msra.mxu0 0.0
        %807 = vmatpush.msra.mxu0 0.0
        %808 = vmatpush.msra.mxu0 0.0
        %809 = vmatpush.msra.mxu0 0.0
        %810 = vmatpush.msra.mxu0 0.0
        %811 = vmatpush.msra.mxu0 0.0
        %812 = vmatpush.msra.mxu0 0.0
        %813 = vmatpush.msra.mxu0 0.0
        %814 = vmatpush.msra.mxu0 0.0
        %815 = vmatpush.msra.mxu0 0.0
        %816 = vmatpush.msra.mxu0 0.0
        %817 = vmatpush.msra.mxu0 0.0
        %818 = vmatpush.msra.mxu0 0.0
        %819 = vmatpush.msra.mxu0 0.0
        %820 = vmatpush.msra.mxu0 %v775
        %821 = vmatpush.msra.mxu0 %v772
        %822 = vmatmul.f32.gmra.mxu0 %v784
        %v823 = vpop.f32.mrf.mxu0
        %v824 = vadd.f32 0.0, %v823
        %825 = vdwg.mxu0
        %826 = vmatpush.msra.mxu0 0.0
        %827 = vmatpush.msra.mxu0 0.0
        %828 = vmatpush.msra.mxu0 0.0
        %829 = vmatpush.msra.mxu0 0.0
        %830 = vmatpush.msra.mxu0 0.0
        %831 = vmatpush.msra.mxu0 0.0
        %832 = vmatpush.msra.mxu0 0.0
        %833 = vmatpush.msra.mxu0 0.0
        %834 = vmatpush.msra.mxu0 0.0
        %835 = vmatpush.msra.mxu0 0.0
        %836 = vmatpush.msra.mxu0 0.0
        %837 = vmatpush.msra.mxu0 0.0
        %838 = vmatpush.msra.mxu0 0.0
        %839 = vmatpush.msra.mxu0 0.0
        %840 = vmatpush.msra.mxu0 %v776
        %841 = vmatpush.msra.mxu0 %v773
        %842 = vmatmul.f32.gmra.mxu0 %v784
        %v843 = vpop.f32.mrf.mxu0
        %v844 = vadd.f32 0.0, %v843
        %845 = vdwg.mxu0
        %v846 = vadd.f32 %v603, %v804
        %v847 = vadd.f32 %v623, %v824
        %v848 = vadd.f32 %v643, %v844
        %849 = vrot.lane.b32.xlu0 %v279, 110
        %v850 = vpop.permute.xlu0 %849
        %851 = vrot.lane.b32.xlu0 %v280, 110
        %v852 = vpop.permute.xlu0 %851
        %853 = vrot.lane.b32.xlu0 %v281, 110
        %v854 = vpop.permute.xlu0 %853
        %855 = vrot.lane.b32.xlu0 %v282, 110
        %v856 = vpop.permute.xlu0 %855
        %857 = vrot.lane.b32.xlu0 %v283, 110
        %v858 = vpop.permute.xlu0 %857
        %859 = vrot.lane.b32.xlu0 %v284, 110
        %v860 = vpop.permute.xlu0 %859
        %861 = vrot.lane.b32.xlu0 %v285, 110
        %v862 = vpop.permute.xlu0 %861
        %863 = vrot.lane.b32.xlu0 %v286, 110
        %v864 = vpop.permute.xlu0 %863
        %vm865 = vcmask 900096
        %v866 = vsel %vm865, %v850, %v852
        %v867 = vsel %vm865, %v852, %v854
        %v868 = vsel %vm865, %v854, %v856
        %v869 = vsel %vm865, %v858, %v860
        %v870 = vsel %vm865, %v860, %v862
        %v871 = vsel %vm865, %v862, %v864
        %v879 = vsel %vm324, %v233, 0
        %v882 = vsel %vm324, %v234, 0
        %884 = vmatpush.msra.mxu0 0.0
        %885 = vmatpush.msra.mxu0 0.0
        %886 = vmatpush.msra.mxu0 0.0
        %887 = vmatpush.msra.mxu0 0.0
        %888 = vmatpush.msra.mxu0 0.0
        %889 = vmatpush.msra.mxu0 0.0
        %890 = vmatpush.msra.mxu0 0.0
        %891 = vmatpush.msra.mxu0 0.0
        %892 = vmatpush.msra.mxu0 0.0
        %893 = vmatpush.msra.mxu0 0.0
        %894 = vmatpush.msra.mxu0 0.0
        %895 = vmatpush.msra.mxu0 0.0
        %896 = vmatpush.msra.mxu0 0.0
        %897 = vmatpush.msra.mxu0 0.0
        %898 = vmatpush.msra.mxu0 %v869
        %899 = vmatpush.msra.mxu0 %v866
        %900 = vmatmul.f32.gmra.mxu0 %v879
        %v901 = vpop.f32.mrf.mxu0
        %v902 = vadd.f32 0.0, %v901
        %903 = vmatmul.f32.gmra.mxu0 %v882
        %v904 = vpop.f32.mrf.mxu0
        %v905 = vadd.f32 0.0, %v904
        %906 = vdwg.mxu0
        %907 = vmatpush.msra.mxu0 0.0
        %908 = vmatpush.msra.mxu0 0.0
        %909 = vmatpush.msra.mxu0 0.0
        %910 = vmatpush.msra.mxu0 0.0
        %911 = vmatpush.msra.mxu0 0.0
        %912 = vmatpush.msra.mxu0 0.0
        %913 = vmatpush.msra.mxu0 0.0
        %914 = vmatpush.msra.mxu0 0.0
        %915 = vmatpush.msra.mxu0 0.0
        %916 = vmatpush.msra.mxu0 0.0
        %917 = vmatpush.msra.mxu0 0.0
        %918 = vmatpush.msra.mxu0 0.0
        %919 = vmatpush.msra.mxu0 0.0
        %920 = vmatpush.msra.mxu0 0.0
        %921 = vmatpush.msra.mxu0 %v870
        %922 = vmatpush.msra.mxu0 %v867
        %923 = vmatmul.f32.gmra.mxu0 %v879
        %v924 = vpop.f32.mrf.mxu0
        %v925 = vadd.f32 0.0, %v924
        %926 = vmatmul.f32.gmra.mxu0 %v882
        %v927 = vpop.f32.mrf.mxu0
        %v928 = vadd.f32 0.0, %v927
        %929 = vdwg.mxu0
        %930 = vmatpush.msra.mxu0 0.0
        %931 = vmatpush.msra.mxu0 0.0
        %932 = vmatpush.msra.mxu0 0.0
        %933 = vmatpush.msra.mxu0 0.0
        %934 = vmatpush.msra.mxu0 0.0
        %935 = vmatpush.msra.mxu0 0.0
        %936 = vmatpush.msra.mxu0 0.0
        %937 = vmatpush.msra.mxu0 0.0
        %938 = vmatpush.msra.mxu0 0.0
        %939 = vmatpush.msra.mxu0 0.0
        %940 = vmatpush.msra.mxu0 0.0
        %941 = vmatpush.msra.mxu0 0.0
        %942 = vmatpush.msra.mxu0 0.0
        %943 = vmatpush.msra.mxu0 0.0
        %944 = vmatpush.msra.mxu0 %v871
        %945 = vmatpush.msra.mxu0 %v868
        %946 = vmatmul.f32.gmra.mxu0 %v879
        %v947 = vpop.f32.mrf.mxu0
        %v948 = vadd.f32 0.0, %v947
        %949 = vmatmul.f32.gmra.mxu0 %v882
        %v950 = vpop.f32.mrf.mxu0
        %v951 = vadd.f32 0.0, %v950
        %952 = vdwg.mxu0
        %v953 = vadd.f32 %v749, %v902
        %v954 = vadd.f32 %v750, %v925
        %v955 = vadd.f32 %v751, %v948
        %v956 = vadd.f32 %v752, %v905
        %v957 = vadd.f32 %v753, %v928
        %v958 = vadd.f32 %v754, %v951
        %959 = vrot.lane.b32.xlu0 %v475, 110
        %v960 = vpop.permute.xlu0 %959
        %961 = vrot.lane.b32.xlu0 %v476, 110
        %v962 = vpop.permute.xlu0 %961
        %963 = vrot.lane.b32.xlu0 %v477, 110
        %v964 = vpop.permute.xlu0 %963
        %965 = vrot.lane.b32.xlu0 %v478, 110
        %v966 = vpop.permute.xlu0 %965
        %967 = vrot.lane.b32.xlu0 %v479, 110
        %v968 = vpop.permute.xlu0 %967
        %969 = vrot.lane.b32.xlu0 %v480, 110
        %v970 = vpop.permute.xlu0 %969
        %971 = vrot.lane.b32.xlu0 %v481, 110
        %v972 = vpop.permute.xlu0 %971
        %973 = vrot.lane.b32.xlu0 %v482, 110
        %v974 = vpop.permute.xlu0 %973
        %v975 = vsel %vm865, %v960, %v962
        %v976 = vsel %vm865, %v962, %v964
        %v977 = vsel %vm865, %v964, %v966
        %v978 = vsel %vm865, %v968, %v970
        %v979 = vsel %vm865, %v970, %v972
        %v980 = vsel %vm865, %v972, %v974
        %v988 = vsel %vm324, %v256, 0
        %990 = vmatpush.msra.mxu0 0.0
        %991 = vmatpush.msra.mxu0 0.0
        %992 = vmatpush.msra.mxu0 0.0
        %993 = vmatpush.msra.mxu0 0.0
        %994 = vmatpush.msra.mxu0 0.0
        %995 = vmatpush.msra.mxu0 0.0
        %996 = vmatpush.msra.mxu0 0.0
        %997 = vmatpush.msra.mxu0 0.0
        %998 = vmatpush.msra.mxu0 0.0
        %999 = vmatpush.msra.mxu0 0.0
        %1000 = vmatpush.msra.mxu0 0.0
        %1001 = vmatpush.msra.mxu0 0.0
        %1002 = vmatpush.msra.mxu0 0.0
        %1003 = vmatpush.msra.mxu0 0.0
        %1004 = vmatpush.msra.mxu0 %v978
        %1005 = vmatpush.msra.mxu0 %v975
        %1006 = vmatmul.f32.gmra.mxu0 %v988
        %v1007 = vpop.f32.mrf.mxu0
        %v1008 = vadd.f32 0.0, %v1007
        %1009 = vdwg.mxu0
        %1010 = vmatpush.msra.mxu0 0.0
        %1011 = vmatpush.msra.mxu0 0.0
        %1012 = vmatpush.msra.mxu0 0.0
        %1013 = vmatpush.msra.mxu0 0.0
        %1014 = vmatpush.msra.mxu0 0.0
        %1015 = vmatpush.msra.mxu0 0.0
        %1016 = vmatpush.msra.mxu0 0.0
        %1017 = vmatpush.msra.mxu0 0.0
        %1018 = vmatpush.msra.mxu0 0.0
        %1019 = vmatpush.msra.mxu0 0.0
        %1020 = vmatpush.msra.mxu0 0.0
        %1021 = vmatpush.msra.mxu0 0.0
        %1022 = vmatpush.msra.mxu0 0.0
        %1023 = vmatpush.msra.mxu0 0.0
        %1024 = vmatpush.msra.mxu0 %v979
        %1025 = vmatpush.msra.mxu0 %v976
        %1026 = vmatmul.f32.gmra.mxu0 %v988
        %v1027 = vpop.f32.mrf.mxu0
        %v1028 = vadd.f32 0.0, %v1027
        %1029 = vdwg.mxu0
        %1030 = vmatpush.msra.mxu0 0.0
        %1031 = vmatpush.msra.mxu0 0.0
        %1032 = vmatpush.msra.mxu0 0.0
        %1033 = vmatpush.msra.mxu0 0.0
        %1034 = vmatpush.msra.mxu0 0.0
        %1035 = vmatpush.msra.mxu0 0.0
        %1036 = vmatpush.msra.mxu0 0.0
        %1037 = vmatpush.msra.mxu0 0.0
        %1038 = vmatpush.msra.mxu0 0.0
        %1039 = vmatpush.msra.mxu0 0.0
        %1040 = vmatpush.msra.mxu0 0.0
        %1041 = vmatpush.msra.mxu0 0.0
        %1042 = vmatpush.msra.mxu0 0.0
        %1043 = vmatpush.msra.mxu0 0.0
        %1044 = vmatpush.msra.mxu0 %v980
        %1045 = vmatpush.msra.mxu0 %v977
        %1046 = vmatmul.f32.gmra.mxu0 %v988
        %v1047 = vpop.f32.mrf.mxu0
        %v1048 = vadd.f32 0.0, %v1047
        %1049 = vdwg.mxu0
        %v1050 = vadd.f32 %v846, %v1008
        %v1051 = vadd.f32 %v847, %v1028
        %v1052 = vadd.f32 %v848, %v1048
        %1053 = vrot.lane.b32.xlu0 %v279, 109
        %v1054 = vpop.permute.xlu0 %1053
        %1055 = vrot.lane.b32.xlu0 %v280, 109
        %v1056 = vpop.permute.xlu0 %1055
        %1057 = vrot.lane.b32.xlu0 %v281, 109
        %v1058 = vpop.permute.xlu0 %1057
        %1059 = vrot.lane.b32.xlu0 %v282, 109
        %v1060 = vpop.permute.xlu0 %1059
        %1061 = vrot.lane.b32.xlu0 %v283, 109
        %v1062 = vpop.permute.xlu0 %1061
        %1063 = vrot.lane.b32.xlu0 %v284, 109
        %v1064 = vpop.permute.xlu0 %1063
        %1065 = vrot.lane.b32.xlu0 %v285, 109
        %v1066 = vpop.permute.xlu0 %1065
        %1067 = vrot.lane.b32.xlu0 %v286, 109
        %v1068 = vpop.permute.xlu0 %1067
        %vm1069 = vcmask 891904
        %v1070 = vsel %vm1069, %v1054, %v1056
        %v1071 = vsel %vm1069, %v1056, %v1058
        %v1072 = vsel %vm1069, %v1058, %v1060
        %v1073 = vsel %vm1069, %v1062, %v1064
        %v1074 = vsel %vm1069, %v1064, %v1066
        %v1075 = vsel %vm1069, %v1066, %v1068
        %v1083 = vsel %vm324, %v236, 0
        %v1086 = vsel %vm324, %v237, 0
        %1088 = vmatpush.msra.mxu0 0.0
        %1089 = vmatpush.msra.mxu0 0.0
        %1090 = vmatpush.msra.mxu0 0.0
        %1091 = vmatpush.msra.mxu0 0.0
        %1092 = vmatpush.msra.mxu0 0.0
        %1093 = vmatpush.msra.mxu0 0.0
        %1094 = vmatpush.msra.mxu0 0.0
        %1095 = vmatpush.msra.mxu0 0.0
        %1096 = vmatpush.msra.mxu0 0.0
        %1097 = vmatpush.msra.mxu0 0.0
        %1098 = vmatpush.msra.mxu0 0.0
        %1099 = vmatpush.msra.mxu0 0.0
        %1100 = vmatpush.msra.mxu0 0.0
        %1101 = vmatpush.msra.mxu0 0.0
        %1102 = vmatpush.msra.mxu0 %v1073
        %1103 = vmatpush.msra.mxu0 %v1070
        %1104 = vmatmul.f32.gmra.mxu0 %v1083
        %v1105 = vpop.f32.mrf.mxu0
        %v1106 = vadd.f32 0.0, %v1105
        %1107 = vmatmul.f32.gmra.mxu0 %v1086
        %v1108 = vpop.f32.mrf.mxu0
        %v1109 = vadd.f32 0.0, %v1108
        %1110 = vdwg.mxu0
        %1111 = vmatpush.msra.mxu0 0.0
        %1112 = vmatpush.msra.mxu0 0.0
        %1113 = vmatpush.msra.mxu0 0.0
        %1114 = vmatpush.msra.mxu0 0.0
        %1115 = vmatpush.msra.mxu0 0.0
        %1116 = vmatpush.msra.mxu0 0.0
        %1117 = vmatpush.msra.mxu0 0.0
        %1118 = vmatpush.msra.mxu0 0.0
        %1119 = vmatpush.msra.mxu0 0.0
        %1120 = vmatpush.msra.mxu0 0.0
        %1121 = vmatpush.msra.mxu0 0.0
        %1122 = vmatpush.msra.mxu0 0.0
        %1123 = vmatpush.msra.mxu0 0.0
        %1124 = vmatpush.msra.mxu0 0.0
        %1125 = vmatpush.msra.mxu0 %v1074
        %1126 = vmatpush.msra.mxu0 %v1071
        %1127 = vmatmul.f32.gmra.mxu0 %v1083
        %v1128 = vpop.f32.mrf.mxu0
        %v1129 = vadd.f32 0.0, %v1128
        %1130 = vmatmul.f32.gmra.mxu0 %v1086
        %v1131 = vpop.f32.mrf.mxu0
        %v1132 = vadd.f32 0.0, %v1131
        %1133 = vdwg.mxu0
        %1134 = vmatpush.msra.mxu0 0.0
        %1135 = vmatpush.msra.mxu0 0.0
        %1136 = vmatpush.msra.mxu0 0.0
        %1137 = vmatpush.msra.mxu0 0.0
        %1138 = vmatpush.msra.mxu0 0.0
        %1139 = vmatpush.msra.mxu0 0.0
        %1140 = vmatpush.msra.mxu0 0.0
        %1141 = vmatpush.msra.mxu0 0.0
        %1142 = vmatpush.msra.mxu0 0.0
        %1143 = vmatpush.msra.mxu0 0.0
        %1144 = vmatpush.msra.mxu0 0.0
        %1145 = vmatpush.msra.mxu0 0.0
        %1146 = vmatpush.msra.mxu0 0.0
        %1147 = vmatpush.msra.mxu0 0.0
        %1148 = vmatpush.msra.mxu0 %v1075
        %1149 = vmatpush.msra.mxu0 %v1072
        %1150 = vmatmul.f32.gmra.mxu0 %v1083
        %v1151 = vpop.f32.mrf.mxu0
        %v1152 = vadd.f32 0.0, %v1151
        %1153 = vmatmul.f32.gmra.mxu0 %v1086
        %v1154 = vpop.f32.mrf.mxu0
        %v1155 = vadd.f32 0.0, %v1154
        %1156 = vdwg.mxu0
        %v1157 = vadd.f32 %v953, %v1106
        %v1158 = vadd.f32 %v954, %v1129
        %v1159 = vadd.f32 %v955, %v1152
        %v1160 = vadd.f32 %v956, %v1109
        %v1161 = vadd.f32 %v957, %v1132
        %v1162 = vadd.f32 %v958, %v1155
        %1163 = vrot.lane.b32.xlu0 %v475, 109
        %v1164 = vpop.permute.xlu0 %1163
        %1165 = vrot.lane.b32.xlu0 %v476, 109
        %v1166 = vpop.permute.xlu0 %1165
        %1167 = vrot.lane.b32.xlu0 %v477, 109
        %v1168 = vpop.permute.xlu0 %1167
        %1169 = vrot.lane.b32.xlu0 %v478, 109
        %v1170 = vpop.permute.xlu0 %1169
        %1171 = vrot.lane.b32.xlu0 %v479, 109
        %v1172 = vpop.permute.xlu0 %1171
        %1173 = vrot.lane.b32.xlu0 %v480, 109
        %v1174 = vpop.permute.xlu0 %1173
        %1175 = vrot.lane.b32.xlu0 %v481, 109
        %v1176 = vpop.permute.xlu0 %1175
        %1177 = vrot.lane.b32.xlu0 %v482, 109
        %v1178 = vpop.permute.xlu0 %1177
        %v1179 = vsel %vm1069, %v1164, %v1166
        %v1180 = vsel %vm1069, %v1166, %v1168
        %v1181 = vsel %vm1069, %v1168, %v1170
        %v1182 = vsel %vm1069, %v1172, %v1174
        %v1183 = vsel %vm1069, %v1174, %v1176
        %v1184 = vsel %vm1069, %v1176, %v1178
        %v1192 = vsel %vm324, %v258, 0
        %1194 = vmatpush.msra.mxu0 0.0
        %1195 = vmatpush.msra.mxu0 0.0
        %1196 = vmatpush.msra.mxu0 0.0
        %1197 = vmatpush.msra.mxu0 0.0
        %1198 = vmatpush.msra.mxu0 0.0
        %1199 = vmatpush.msra.mxu0 0.0
        %1200 = vmatpush.msra.mxu0 0.0
        %1201 = vmatpush.msra.mxu0 0.0
        %1202 = vmatpush.msra.mxu0 0.0
        %1203 = vmatpush.msra.mxu0 0.0
        %1204 = vmatpush.msra.mxu0 0.0
        %1205 = vmatpush.msra.mxu0 0.0
        %1206 = vmatpush.msra.mxu0 0.0
        %1207 = vmatpush.msra.mxu0 0.0
        %1208 = vmatpush.msra.mxu0 %v1182
        %1209 = vmatpush.msra.mxu0 %v1179
        %1210 = vmatmul.f32.gmra.mxu0 %v1192
        %v1211 = vpop.f32.mrf.mxu0
        %v1212 = vadd.f32 0.0, %v1211
        %1213 = vdwg.mxu0
        %1214 = vmatpush.msra.mxu0 0.0
        %1215 = vmatpush.msra.mxu0 0.0
        %1216 = vmatpush.msra.mxu0 0.0
        %1217 = vmatpush.msra.mxu0 0.0
        %1218 = vmatpush.msra.mxu0 0.0
        %1219 = vmatpush.msra.mxu0 0.0
        %1220 = vmatpush.msra.mxu0 0.0
        %1221 = vmatpush.msra.mxu0 0.0
        %1222 = vmatpush.msra.mxu0 0.0
        %1223 = vmatpush.msra.mxu0 0.0
        %1224 = vmatpush.msra.mxu0 0.0
        %1225 = vmatpush.msra.mxu0 0.0
        %1226 = vmatpush.msra.mxu0 0.0
        %1227 = vmatpush.msra.mxu0 0.0
        %1228 = vmatpush.msra.mxu0 %v1183
        %1229 = vmatpush.msra.mxu0 %v1180
        %1230 = vmatmul.f32.gmra.mxu0 %v1192
        %v1231 = vpop.f32.mrf.mxu0
        %v1232 = vadd.f32 0.0, %v1231
        %1233 = vdwg.mxu0
        %1234 = vmatpush.msra.mxu0 0.0
        %1235 = vmatpush.msra.mxu0 0.0
        %1236 = vmatpush.msra.mxu0 0.0
        %1237 = vmatpush.msra.mxu0 0.0
        %1238 = vmatpush.msra.mxu0 0.0
        %1239 = vmatpush.msra.mxu0 0.0
        %1240 = vmatpush.msra.mxu0 0.0
        %1241 = vmatpush.msra.mxu0 0.0
        %1242 = vmatpush.msra.mxu0 0.0
        %1243 = vmatpush.msra.mxu0 0.0
        %1244 = vmatpush.msra.mxu0 0.0
        %1245 = vmatpush.msra.mxu0 0.0
        %1246 = vmatpush.msra.mxu0 0.0
        %1247 = vmatpush.msra.mxu0 0.0
        %1248 = vmatpush.msra.mxu0 %v1184
        %1249 = vmatpush.msra.mxu0 %v1181
        %1250 = vmatmul.f32.gmra.mxu0 %v1192
        %v1251 = vpop.f32.mrf.mxu0
        %v1252 = vadd.f32 0.0, %v1251
        %1253 = vdwg.mxu0
        %v1254 = vadd.f32 %v1050, %v1212
        %v1255 = vadd.f32 %v1051, %v1232
        %v1256 = vadd.f32 %v1052, %v1252
        %1257 = vrot.lane.b32.xlu0 %v279, 108
        %v1258 = vpop.permute.xlu0 %1257
        %1259 = vrot.lane.b32.xlu0 %v280, 108
        %v1260 = vpop.permute.xlu0 %1259
        %1261 = vrot.lane.b32.xlu0 %v281, 108
        %v1262 = vpop.permute.xlu0 %1261
        %1263 = vrot.lane.b32.xlu0 %v282, 108
        %v1264 = vpop.permute.xlu0 %1263
        %1265 = vrot.lane.b32.xlu0 %v283, 108
        %v1266 = vpop.permute.xlu0 %1265
        %1267 = vrot.lane.b32.xlu0 %v284, 108
        %v1268 = vpop.permute.xlu0 %1267
        %1269 = vrot.lane.b32.xlu0 %v285, 108
        %v1270 = vpop.permute.xlu0 %1269
        %1271 = vrot.lane.b32.xlu0 %v286, 108
        %v1272 = vpop.permute.xlu0 %1271
        %vm1273 = vcmask 883712
        %v1274 = vsel %vm1273, %v1258, %v1260
        %v1275 = vsel %vm1273, %v1260, %v1262
        %v1276 = vsel %vm1273, %v1262, %v1264
        %v1277 = vsel %vm1273, %v1266, %v1268
        %v1278 = vsel %vm1273, %v1268, %v1270
        %v1279 = vsel %vm1273, %v1270, %v1272
        %v1287 = vsel %vm324, %v239, 0
        %v1290 = vsel %vm324, %v240, 0
        %1292 = vmatpush.msra.mxu0 0.0
        %1293 = vmatpush.msra.mxu0 0.0
        %1294 = vmatpush.msra.mxu0 0.0
        %1295 = vmatpush.msra.mxu0 0.0
        %1296 = vmatpush.msra.mxu0 0.0
        %1297 = vmatpush.msra.mxu0 0.0
        %1298 = vmatpush.msra.mxu0 0.0
        %1299 = vmatpush.msra.mxu0 0.0
        %1300 = vmatpush.msra.mxu0 0.0
        %1301 = vmatpush.msra.mxu0 0.0
        %1302 = vmatpush.msra.mxu0 0.0
        %1303 = vmatpush.msra.mxu0 0.0
        %1304 = vmatpush.msra.mxu0 0.0
        %1305 = vmatpush.msra.mxu0 0.0
        %1306 = vmatpush.msra.mxu0 %v1277
        %1307 = vmatpush.msra.mxu0 %v1274
        %1308 = vmatmul.f32.gmra.mxu0 %v1287
        %v1309 = vpop.f32.mrf.mxu0
        %v1310 = vadd.f32 0.0, %v1309
        %1311 = vmatmul.f32.gmra.mxu0 %v1290
        %v1312 = vpop.f32.mrf.mxu0
        %v1313 = vadd.f32 0.0, %v1312
        %1314 = vdwg.mxu0
        %1315 = vmatpush.msra.mxu0 0.0
        %1316 = vmatpush.msra.mxu0 0.0
        %1317 = vmatpush.msra.mxu0 0.0
        %1318 = vmatpush.msra.mxu0 0.0
        %1319 = vmatpush.msra.mxu0 0.0
        %1320 = vmatpush.msra.mxu0 0.0
        %1321 = vmatpush.msra.mxu0 0.0
        %1322 = vmatpush.msra.mxu0 0.0
        %1323 = vmatpush.msra.mxu0 0.0
        %1324 = vmatpush.msra.mxu0 0.0
        %1325 = vmatpush.msra.mxu0 0.0
        %1326 = vmatpush.msra.mxu0 0.0
        %1327 = vmatpush.msra.mxu0 0.0
        %1328 = vmatpush.msra.mxu0 0.0
        %1329 = vmatpush.msra.mxu0 %v1278
        %1330 = vmatpush.msra.mxu0 %v1275
        %1331 = vmatmul.f32.gmra.mxu0 %v1287
        %v1332 = vpop.f32.mrf.mxu0
        %v1333 = vadd.f32 0.0, %v1332
        %1334 = vmatmul.f32.gmra.mxu0 %v1290
        %v1335 = vpop.f32.mrf.mxu0
        %v1336 = vadd.f32 0.0, %v1335
        %1337 = vdwg.mxu0
        %1338 = vmatpush.msra.mxu0 0.0
        %1339 = vmatpush.msra.mxu0 0.0
        %1340 = vmatpush.msra.mxu0 0.0
        %1341 = vmatpush.msra.mxu0 0.0
        %1342 = vmatpush.msra.mxu0 0.0
        %1343 = vmatpush.msra.mxu0 0.0
        %1344 = vmatpush.msra.mxu0 0.0
        %1345 = vmatpush.msra.mxu0 0.0
        %1346 = vmatpush.msra.mxu0 0.0
        %1347 = vmatpush.msra.mxu0 0.0
        %1348 = vmatpush.msra.mxu0 0.0
        %1349 = vmatpush.msra.mxu0 0.0
        %1350 = vmatpush.msra.mxu0 0.0
        %1351 = vmatpush.msra.mxu0 0.0
        %1352 = vmatpush.msra.mxu0 %v1279
        %1353 = vmatpush.msra.mxu0 %v1276
        %1354 = vmatmul.f32.gmra.mxu0 %v1287
        %v1355 = vpop.f32.mrf.mxu0
        %v1356 = vadd.f32 0.0, %v1355
        %1357 = vmatmul.f32.gmra.mxu0 %v1290
        %v1358 = vpop.f32.mrf.mxu0
        %v1359 = vadd.f32 0.0, %v1358
        %1360 = vdwg.mxu0
        %v1361 = vadd.f32 %v1157, %v1310
        %v1362 = vadd.f32 %v1158, %v1333
        %v1363 = vadd.f32 %v1159, %v1356
        %v1364 = vadd.f32 %v1160, %v1313
        %v1365 = vadd.f32 %v1161, %v1336
        %v1366 = vadd.f32 %v1162, %v1359
        %1367 = vrot.lane.b32.xlu0 %v475, 108
        %v1368 = vpop.permute.xlu0 %1367
        %1369 = vrot.lane.b32.xlu0 %v476, 108
        %v1370 = vpop.permute.xlu0 %1369
        %1371 = vrot.lane.b32.xlu0 %v477, 108
        %v1372 = vpop.permute.xlu0 %1371
        %1373 = vrot.lane.b32.xlu0 %v478, 108
        %v1374 = vpop.permute.xlu0 %1373
        %1375 = vrot.lane.b32.xlu0 %v479, 108
        %v1376 = vpop.permute.xlu0 %1375
        %1377 = vrot.lane.b32.xlu0 %v480, 108
        %v1378 = vpop.permute.xlu0 %1377
        %1379 = vrot.lane.b32.xlu0 %v481, 108
        %v1380 = vpop.permute.xlu0 %1379
        %1381 = vrot.lane.b32.xlu0 %v482, 108
        %v1382 = vpop.permute.xlu0 %1381
        %v1383 = vsel %vm1273, %v1368, %v1370
        %v1384 = vsel %vm1273, %v1370, %v1372
        %v1385 = vsel %vm1273, %v1372, %v1374
        %v1386 = vsel %vm1273, %v1376, %v1378
        %v1387 = vsel %vm1273, %v1378, %v1380
        %v1388 = vsel %vm1273, %v1380, %v1382
        %v1396 = vsel %vm324, %v260, 0
        %1398 = vmatpush.msra.mxu0 0.0
        %1399 = vmatpush.msra.mxu0 0.0
        %1400 = vmatpush.msra.mxu0 0.0
        %1401 = vmatpush.msra.mxu0 0.0
        %1402 = vmatpush.msra.mxu0 0.0
        %1403 = vmatpush.msra.mxu0 0.0
        %1404 = vmatpush.msra.mxu0 0.0
        %1405 = vmatpush.msra.mxu0 0.0
        %1406 = vmatpush.msra.mxu0 0.0
        %1407 = vmatpush.msra.mxu0 0.0
        %1408 = vmatpush.msra.mxu0 0.0
        %1409 = vmatpush.msra.mxu0 0.0
        %1410 = vmatpush.msra.mxu0 0.0
        %1411 = vmatpush.msra.mxu0 0.0
        %1412 = vmatpush.msra.mxu0 %v1386
        %1413 = vmatpush.msra.mxu0 %v1383
        %1414 = vmatmul.f32.gmra.mxu0 %v1396
        %v1415 = vpop.f32.mrf.mxu0
        %v1416 = vadd.f32 0.0, %v1415
        %1417 = vdwg.mxu0
        %1418 = vmatpush.msra.mxu0 0.0
        %1419 = vmatpush.msra.mxu0 0.0
        %1420 = vmatpush.msra.mxu0 0.0
        %1421 = vmatpush.msra.mxu0 0.0
        %1422 = vmatpush.msra.mxu0 0.0
        %1423 = vmatpush.msra.mxu0 0.0
        %1424 = vmatpush.msra.mxu0 0.0
        %1425 = vmatpush.msra.mxu0 0.0
        %1426 = vmatpush.msra.mxu0 0.0
        %1427 = vmatpush.msra.mxu0 0.0
        %1428 = vmatpush.msra.mxu0 0.0
        %1429 = vmatpush.msra.mxu0 0.0
        %1430 = vmatpush.msra.mxu0 0.0
        %1431 = vmatpush.msra.mxu0 0.0
        %1432 = vmatpush.msra.mxu0 %v1387
        %1433 = vmatpush.msra.mxu0 %v1384
        %1434 = vmatmul.f32.gmra.mxu0 %v1396
        %v1435 = vpop.f32.mrf.mxu0
        %v1436 = vadd.f32 0.0, %v1435
        %1437 = vdwg.mxu0
        %1438 = vmatpush.msra.mxu0 0.0
        %1439 = vmatpush.msra.mxu0 0.0
        %1440 = vmatpush.msra.mxu0 0.0
        %1441 = vmatpush.msra.mxu0 0.0
        %1442 = vmatpush.msra.mxu0 0.0
        %1443 = vmatpush.msra.mxu0 0.0
        %1444 = vmatpush.msra.mxu0 0.0
        %1445 = vmatpush.msra.mxu0 0.0
        %1446 = vmatpush.msra.mxu0 0.0
        %1447 = vmatpush.msra.mxu0 0.0
        %1448 = vmatpush.msra.mxu0 0.0
        %1449 = vmatpush.msra.mxu0 0.0
        %1450 = vmatpush.msra.mxu0 0.0
        %1451 = vmatpush.msra.mxu0 0.0
        %1452 = vmatpush.msra.mxu0 %v1388
        %1453 = vmatpush.msra.mxu0 %v1385
        %1454 = vmatmul.f32.gmra.mxu0 %v1396
        %v1455 = vpop.f32.mrf.mxu0
        %v1456 = vadd.f32 0.0, %v1455
        %1457 = vdwg.mxu0
        %v1458 = vadd.f32 %v1254, %v1416
        %v1459 = vadd.f32 %v1255, %v1436
        %v1460 = vadd.f32 %v1256, %v1456
        %1461 = vrot.lane.b32.xlu0 %v279, 92
        %v1462 = vpop.permute.xlu0 %1461
        %1463 = vrot.lane.b32.xlu0 %v280, 92
        %v1464 = vpop.permute.xlu0 %1463
        %1465 = vrot.lane.b32.xlu0 %v281, 92
        %v1466 = vpop.permute.xlu0 %1465
        %1467 = vrot.lane.b32.xlu0 %v282, 92
        %v1468 = vpop.permute.xlu0 %1467
        %1469 = vrot.lane.b32.xlu0 %v283, 92
        %v1470 = vpop.permute.xlu0 %1469
        %1471 = vrot.lane.b32.xlu0 %v284, 92
        %v1472 = vpop.permute.xlu0 %1471
        %1473 = vrot.lane.b32.xlu0 %v285, 92
        %v1474 = vpop.permute.xlu0 %1473
        %1475 = vrot.lane.b32.xlu0 %v286, 92
        %v1476 = vpop.permute.xlu0 %1475
        %vm1477 = vcmask 752640
        %v1478 = vsel %vm1477, %v1462, %v1464
        %v1479 = vsel %vm1477, %v1464, %v1466
        %v1480 = vsel %vm1477, %v1466, %v1468
        %v1481 = vsel %vm1477, %v1470, %v1472
        %v1482 = vsel %vm1477, %v1472, %v1474
        %v1483 = vsel %vm1477, %v1474, %v1476
        %v1491 = vsel %vm324, %v242, 0
        %v1494 = vsel %vm324, %v243, 0
        %1496 = vmatpush.msra.mxu0 0.0
        %1497 = vmatpush.msra.mxu0 0.0
        %1498 = vmatpush.msra.mxu0 0.0
        %1499 = vmatpush.msra.mxu0 0.0
        %1500 = vmatpush.msra.mxu0 0.0
        %1501 = vmatpush.msra.mxu0 0.0
        %1502 = vmatpush.msra.mxu0 0.0
        %1503 = vmatpush.msra.mxu0 0.0
        %1504 = vmatpush.msra.mxu0 0.0
        %1505 = vmatpush.msra.mxu0 0.0
        %1506 = vmatpush.msra.mxu0 0.0
        %1507 = vmatpush.msra.mxu0 0.0
        %1508 = vmatpush.msra.mxu0 0.0
        %1509 = vmatpush.msra.mxu0 0.0
        %1510 = vmatpush.msra.mxu0 %v1481
        %1511 = vmatpush.msra.mxu0 %v1478
        %1512 = vmatmul.f32.gmra.mxu0 %v1491
        %v1513 = vpop.f32.mrf.mxu0
        %v1514 = vadd.f32 0.0, %v1513
        %1515 = vmatmul.f32.gmra.mxu0 %v1494
        %v1516 = vpop.f32.mrf.mxu0
        %v1517 = vadd.f32 0.0, %v1516
        %1518 = vdwg.mxu0
        %1519 = vmatpush.msra.mxu0 0.0
        %1520 = vmatpush.msra.mxu0 0.0
        %1521 = vmatpush.msra.mxu0 0.0
        %1522 = vmatpush.msra.mxu0 0.0
        %1523 = vmatpush.msra.mxu0 0.0
        %1524 = vmatpush.msra.mxu0 0.0
        %1525 = vmatpush.msra.mxu0 0.0
        %1526 = vmatpush.msra.mxu0 0.0
        %1527 = vmatpush.msra.mxu0 0.0
        %1528 = vmatpush.msra.mxu0 0.0
        %1529 = vmatpush.msra.mxu0 0.0
        %1530 = vmatpush.msra.mxu0 0.0
        %1531 = vmatpush.msra.mxu0 0.0
        %1532 = vmatpush.msra.mxu0 0.0
        %1533 = vmatpush.msra.mxu0 %v1482
        %1534 = vmatpush.msra.mxu0 %v1479
        %1535 = vmatmul.f32.gmra.mxu0 %v1491
        %v1536 = vpop.f32.mrf.mxu0
        %v1537 = vadd.f32 0.0, %v1536
        %1538 = vmatmul.f32.gmra.mxu0 %v1494
        %v1539 = vpop.f32.mrf.mxu0
        %v1540 = vadd.f32 0.0, %v1539
        %1541 = vdwg.mxu0
        %1542 = vmatpush.msra.mxu0 0.0
        %1543 = vmatpush.msra.mxu0 0.0
        %1544 = vmatpush.msra.mxu0 0.0
        %1545 = vmatpush.msra.mxu0 0.0
        %1546 = vmatpush.msra.mxu0 0.0
        %1547 = vmatpush.msra.mxu0 0.0
        %1548 = vmatpush.msra.mxu0 0.0
        %1549 = vmatpush.msra.mxu0 0.0
        %1550 = vmatpush.msra.mxu0 0.0
        %1551 = vmatpush.msra.mxu0 0.0
        %1552 = vmatpush.msra.mxu0 0.0
        %1553 = vmatpush.msra.mxu0 0.0
        %1554 = vmatpush.msra.mxu0 0.0
        %1555 = vmatpush.msra.mxu0 0.0
        %1556 = vmatpush.msra.mxu0 %v1483
        %1557 = vmatpush.msra.mxu0 %v1480
        %1558 = vmatmul.f32.gmra.mxu0 %v1491
        %v1559 = vpop.f32.mrf.mxu0
        %v1560 = vadd.f32 0.0, %v1559
        %1561 = vmatmul.f32.gmra.mxu0 %v1494
        %v1562 = vpop.f32.mrf.mxu0
        %v1563 = vadd.f32 0.0, %v1562
        %1564 = vdwg.mxu0
        %v1565 = vadd.f32 %v1361, %v1514
        %v1566 = vadd.f32 %v1362, %v1537
        %v1567 = vadd.f32 %v1363, %v1560
        %v1568 = vadd.f32 %v1364, %v1517
        %v1569 = vadd.f32 %v1365, %v1540
        %v1570 = vadd.f32 %v1366, %v1563
        %1571 = vrot.lane.b32.xlu0 %v475, 92
        %v1572 = vpop.permute.xlu0 %1571
        %1573 = vrot.lane.b32.xlu0 %v476, 92
        %v1574 = vpop.permute.xlu0 %1573
        %1575 = vrot.lane.b32.xlu0 %v477, 92
        %v1576 = vpop.permute.xlu0 %1575
        %1577 = vrot.lane.b32.xlu0 %v478, 92
        %v1578 = vpop.permute.xlu0 %1577
        %1579 = vrot.lane.b32.xlu0 %v479, 92
        %v1580 = vpop.permute.xlu0 %1579
        %1581 = vrot.lane.b32.xlu0 %v480, 92
        %v1582 = vpop.permute.xlu0 %1581
        %1583 = vrot.lane.b32.xlu0 %v481, 92
        %v1584 = vpop.permute.xlu0 %1583
        %1585 = vrot.lane.b32.xlu0 %v482, 92
        %v1586 = vpop.permute.xlu0 %1585
        %v1587 = vsel %vm1477, %v1572, %v1574
        %v1588 = vsel %vm1477, %v1574, %v1576
        %v1589 = vsel %vm1477, %v1576, %v1578
        %v1590 = vsel %vm1477, %v1580, %v1582
        %v1591 = vsel %vm1477, %v1582, %v1584
        %v1592 = vsel %vm1477, %v1584, %v1586
        %v1600 = vsel %vm324, %v262, 0
        %1602 = vmatpush.msra.mxu0 0.0
        %1603 = vmatpush.msra.mxu0 0.0
        %1604 = vmatpush.msra.mxu0 0.0
        %1605 = vmatpush.msra.mxu0 0.0
        %1606 = vmatpush.msra.mxu0 0.0
        %1607 = vmatpush.msra.mxu0 0.0
        %1608 = vmatpush.msra.mxu0 0.0
        %1609 = vmatpush.msra.mxu0 0.0
        %1610 = vmatpush.msra.mxu0 0.0
        %1611 = vmatpush.msra.mxu0 0.0
        %1612 = vmatpush.msra.mxu0 0.0
        %1613 = vmatpush.msra.mxu0 0.0
        %1614 = vmatpush.msra.mxu0 0.0
        %1615 = vmatpush.msra.mxu0 0.0
        %1616 = vmatpush.msra.mxu0 %v1590
        %1617 = vmatpush.msra.mxu0 %v1587
        %1618 = vmatmul.f32.gmra.mxu0 %v1600
        %v1619 = vpop.f32.mrf.mxu0
        %v1620 = vadd.f32 0.0, %v1619
        %1621 = vdwg.mxu0
        %1622 = vmatpush.msra.mxu0 0.0
        %1623 = vmatpush.msra.mxu0 0.0
        %1624 = vmatpush.msra.mxu0 0.0
        %1625 = vmatpush.msra.mxu0 0.0
        %1626 = vmatpush.msra.mxu0 0.0
        %1627 = vmatpush.msra.mxu0 0.0
        %1628 = vmatpush.msra.mxu0 0.0
        %1629 = vmatpush.msra.mxu0 0.0
        %1630 = vmatpush.msra.mxu0 0.0
        %1631 = vmatpush.msra.mxu0 0.0
        %1632 = vmatpush.msra.mxu0 0.0
        %1633 = vmatpush.msra.mxu0 0.0
        %1634 = vmatpush.msra.mxu0 0.0
        %1635 = vmatpush.msra.mxu0 0.0
        %1636 = vmatpush.msra.mxu0 %v1591
        %1637 = vmatpush.msra.mxu0 %v1588
        %1638 = vmatmul.f32.gmra.mxu0 %v1600
        %v1639 = vpop.f32.mrf.mxu0
        %v1640 = vadd.f32 0.0, %v1639
        %1641 = vdwg.mxu0
        %1642 = vmatpush.msra.mxu0 0.0
        %1643 = vmatpush.msra.mxu0 0.0
        %1644 = vmatpush.msra.mxu0 0.0
        %1645 = vmatpush.msra.mxu0 0.0
        %1646 = vmatpush.msra.mxu0 0.0
        %1647 = vmatpush.msra.mxu0 0.0
        %1648 = vmatpush.msra.mxu0 0.0
        %1649 = vmatpush.msra.mxu0 0.0
        %1650 = vmatpush.msra.mxu0 0.0
        %1651 = vmatpush.msra.mxu0 0.0
        %1652 = vmatpush.msra.mxu0 0.0
        %1653 = vmatpush.msra.mxu0 0.0
        %1654 = vmatpush.msra.mxu0 0.0
        %1655 = vmatpush.msra.mxu0 0.0
        %1656 = vmatpush.msra.mxu0 %v1592
        %1657 = vmatpush.msra.mxu0 %v1589
        %1658 = vmatmul.f32.gmra.mxu0 %v1600
        %v1659 = vpop.f32.mrf.mxu0
        %v1660 = vadd.f32 0.0, %v1659
        %1661 = vdwg.mxu0
        %v1662 = vadd.f32 %v1458, %v1620
        %v1663 = vadd.f32 %v1459, %v1640
        %v1664 = vadd.f32 %v1460, %v1660
        %1665 = vrot.lane.b32.xlu0 %v279, 91
        %v1666 = vpop.permute.xlu0 %1665
        %1667 = vrot.lane.b32.xlu0 %v280, 91
        %v1668 = vpop.permute.xlu0 %1667
        %1669 = vrot.lane.b32.xlu0 %v281, 91
        %v1670 = vpop.permute.xlu0 %1669
        %1671 = vrot.lane.b32.xlu0 %v282, 91
        %v1672 = vpop.permute.xlu0 %1671
        %1673 = vrot.lane.b32.xlu0 %v283, 91
        %v1674 = vpop.permute.xlu0 %1673
        %1675 = vrot.lane.b32.xlu0 %v284, 91
        %v1676 = vpop.permute.xlu0 %1675
        %1677 = vrot.lane.b32.xlu0 %v285, 91
        %v1678 = vpop.permute.xlu0 %1677
        %1679 = vrot.lane.b32.xlu0 %v286, 91
        %v1680 = vpop.permute.xlu0 %1679
        %vm1681 = vcmask 744448
        %v1682 = vsel %vm1681, %v1666, %v1668
        %v1683 = vsel %vm1681, %v1668, %v1670
        %v1684 = vsel %vm1681, %v1670, %v1672
        %v1685 = vsel %vm1681, %v1674, %v1676
        %v1686 = vsel %vm1681, %v1676, %v1678
        %v1687 = vsel %vm1681, %v1678, %v1680
        %v1695 = vsel %vm324, %v245, 0
        %v1698 = vsel %vm324, %v246, 0
        %1700 = vmatpush.msra.mxu0 0.0
        %1701 = vmatpush.msra.mxu0 0.0
        %1702 = vmatpush.msra.mxu0 0.0
        %1703 = vmatpush.msra.mxu0 0.0
        %1704 = vmatpush.msra.mxu0 0.0
        %1705 = vmatpush.msra.mxu0 0.0
        %1706 = vmatpush.msra.mxu0 0.0
        %1707 = vmatpush.msra.mxu0 0.0
        %1708 = vmatpush.msra.mxu0 0.0
        %1709 = vmatpush.msra.mxu0 0.0
        %1710 = vmatpush.msra.mxu0 0.0
        %1711 = vmatpush.msra.mxu0 0.0
        %1712 = vmatpush.msra.mxu0 0.0
        %1713 = vmatpush.msra.mxu0 0.0
        %1714 = vmatpush.msra.mxu0 %v1685
        %1715 = vmatpush.msra.mxu0 %v1682
        %1716 = vmatmul.f32.gmra.mxu0 %v1695
        %v1717 = vpop.f32.mrf.mxu0
        %v1718 = vadd.f32 0.0, %v1717
        %1719 = vmatmul.f32.gmra.mxu0 %v1698
        %v1720 = vpop.f32.mrf.mxu0
        %v1721 = vadd.f32 0.0, %v1720
        %1722 = vdwg.mxu0
        %1723 = vmatpush.msra.mxu0 0.0
        %1724 = vmatpush.msra.mxu0 0.0
        %1725 = vmatpush.msra.mxu0 0.0
        %1726 = vmatpush.msra.mxu0 0.0
        %1727 = vmatpush.msra.mxu0 0.0
        %1728 = vmatpush.msra.mxu0 0.0
        %1729 = vmatpush.msra.mxu0 0.0
        %1730 = vmatpush.msra.mxu0 0.0
        %1731 = vmatpush.msra.mxu0 0.0
        %1732 = vmatpush.msra.mxu0 0.0
        %1733 = vmatpush.msra.mxu0 0.0
        %1734 = vmatpush.msra.mxu0 0.0
        %1735 = vmatpush.msra.mxu0 0.0
        %1736 = vmatpush.msra.mxu0 0.0
        %1737 = vmatpush.msra.mxu0 %v1686
        %1738 = vmatpush.msra.mxu0 %v1683
        %1739 = vmatmul.f32.gmra.mxu0 %v1695
        %v1740 = vpop.f32.mrf.mxu0
        %v1741 = vadd.f32 0.0, %v1740
        %1742 = vmatmul.f32.gmra.mxu0 %v1698
        %v1743 = vpop.f32.mrf.mxu0
        %v1744 = vadd.f32 0.0, %v1743
        %1745 = vdwg.mxu0
        %1746 = vmatpush.msra.mxu0 0.0
        %1747 = vmatpush.msra.mxu0 0.0
        %1748 = vmatpush.msra.mxu0 0.0
        %1749 = vmatpush.msra.mxu0 0.0
        %1750 = vmatpush.msra.mxu0 0.0
        %1751 = vmatpush.msra.mxu0 0.0
        %1752 = vmatpush.msra.mxu0 0.0
        %1753 = vmatpush.msra.mxu0 0.0
        %1754 = vmatpush.msra.mxu0 0.0
        %1755 = vmatpush.msra.mxu0 0.0
        %1756 = vmatpush.msra.mxu0 0.0
        %1757 = vmatpush.msra.mxu0 0.0
        %1758 = vmatpush.msra.mxu0 0.0
        %1759 = vmatpush.msra.mxu0 0.0
        %1760 = vmatpush.msra.mxu0 %v1687
        %1761 = vmatpush.msra.mxu0 %v1684
        %1762 = vmatmul.f32.gmra.mxu0 %v1695
        %v1763 = vpop.f32.mrf.mxu0
        %v1764 = vadd.f32 0.0, %v1763
        %1765 = vmatmul.f32.gmra.mxu0 %v1698
        %v1766 = vpop.f32.mrf.mxu0
        %v1767 = vadd.f32 0.0, %v1766
        %1768 = vdwg.mxu0
        %v1769 = vadd.f32 %v1565, %v1718
        %v1770 = vadd.f32 %v1566, %v1741
        %v1771 = vadd.f32 %v1567, %v1764
        %v1772 = vadd.f32 %v1568, %v1721
        %v1773 = vadd.f32 %v1569, %v1744
        %v1774 = vadd.f32 %v1570, %v1767
        %1775 = vrot.lane.b32.xlu0 %v475, 91
        %v1776 = vpop.permute.xlu0 %1775
        %1777 = vrot.lane.b32.xlu0 %v476, 91
        %v1778 = vpop.permute.xlu0 %1777
        %1779 = vrot.lane.b32.xlu0 %v477, 91
        %v1780 = vpop.permute.xlu0 %1779
        %1781 = vrot.lane.b32.xlu0 %v478, 91
        %v1782 = vpop.permute.xlu0 %1781
        %1783 = vrot.lane.b32.xlu0 %v479, 91
        %v1784 = vpop.permute.xlu0 %1783
        %1785 = vrot.lane.b32.xlu0 %v480, 91
        %v1786 = vpop.permute.xlu0 %1785
        %1787 = vrot.lane.b32.xlu0 %v481, 91
        %v1788 = vpop.permute.xlu0 %1787
        %1789 = vrot.lane.b32.xlu0 %v482, 91
        %v1790 = vpop.permute.xlu0 %1789
        %v1791 = vsel %vm1681, %v1776, %v1778
        %v1792 = vsel %vm1681, %v1778, %v1780
        %v1793 = vsel %vm1681, %v1780, %v1782
        %v1794 = vsel %vm1681, %v1784, %v1786
        %v1795 = vsel %vm1681, %v1786, %v1788
        %v1796 = vsel %vm1681, %v1788, %v1790
        %v1804 = vsel %vm324, %v264, 0
        %1806 = vmatpush.msra.mxu0 0.0
        %1807 = vmatpush.msra.mxu0 0.0
        %1808 = vmatpush.msra.mxu0 0.0
        %1809 = vmatpush.msra.mxu0 0.0
        %1810 = vmatpush.msra.mxu0 0.0
        %1811 = vmatpush.msra.mxu0 0.0
        %1812 = vmatpush.msra.mxu0 0.0
        %1813 = vmatpush.msra.mxu0 0.0
        %1814 = vmatpush.msra.mxu0 0.0
        %1815 = vmatpush.msra.mxu0 0.0
        %1816 = vmatpush.msra.mxu0 0.0
        %1817 = vmatpush.msra.mxu0 0.0
        %1818 = vmatpush.msra.mxu0 0.0
        %1819 = vmatpush.msra.mxu0 0.0
        %1820 = vmatpush.msra.mxu0 %v1794
        %1821 = vmatpush.msra.mxu0 %v1791
        %1822 = vmatmul.f32.gmra.mxu0 %v1804
        %v1823 = vpop.f32.mrf.mxu0
        %v1824 = vadd.f32 0.0, %v1823
        %1825 = vdwg.mxu0
        %1826 = vmatpush.msra.mxu0 0.0
        %1827 = vmatpush.msra.mxu0 0.0
        %1828 = vmatpush.msra.mxu0 0.0
        %1829 = vmatpush.msra.mxu0 0.0
        %1830 = vmatpush.msra.mxu0 0.0
        %1831 = vmatpush.msra.mxu0 0.0
        %1832 = vmatpush.msra.mxu0 0.0
        %1833 = vmatpush.msra.mxu0 0.0
        %1834 = vmatpush.msra.mxu0 0.0
        %1835 = vmatpush.msra.mxu0 0.0
        %1836 = vmatpush.msra.mxu0 0.0
        %1837 = vmatpush.msra.mxu0 0.0
        %1838 = vmatpush.msra.mxu0 0.0
        %1839 = vmatpush.msra.mxu0 0.0
        %1840 = vmatpush.msra.mxu0 %v1795
        %1841 = vmatpush.msra.mxu0 %v1792
        %1842 = vmatmul.f32.gmra.mxu0 %v1804
        %v1843 = vpop.f32.mrf.mxu0
        %v1844 = vadd.f32 0.0, %v1843
        %1845 = vdwg.mxu0
        %1846 = vmatpush.msra.mxu0 0.0
        %1847 = vmatpush.msra.mxu0 0.0
        %1848 = vmatpush.msra.mxu0 0.0
        %1849 = vmatpush.msra.mxu0 0.0
        %1850 = vmatpush.msra.mxu0 0.0
        %1851 = vmatpush.msra.mxu0 0.0
        %1852 = vmatpush.msra.mxu0 0.0
        %1853 = vmatpush.msra.mxu0 0.0
        %1854 = vmatpush.msra.mxu0 0.0
        %1855 = vmatpush.msra.mxu0 0.0
        %1856 = vmatpush.msra.mxu0 0.0
        %1857 = vmatpush.msra.mxu0 0.0
        %1858 = vmatpush.msra.mxu0 0.0
        %1859 = vmatpush.msra.mxu0 0.0
        %1860 = vmatpush.msra.mxu0 %v1796
        %1861 = vmatpush.msra.mxu0 %v1793
        %1862 = vmatmul.f32.gmra.mxu0 %v1804
        %v1863 = vpop.f32.mrf.mxu0
        %v1864 = vadd.f32 0.0, %v1863
        %1865 = vdwg.mxu0
        %v1866 = vadd.f32 %v1662, %v1824
        %v1867 = vadd.f32 %v1663, %v1844
        %v1868 = vadd.f32 %v1664, %v1864
        %1869 = vrot.lane.b32.xlu0 %v279, 90
        %v1870 = vpop.permute.xlu0 %1869
        %1871 = vrot.lane.b32.xlu0 %v280, 90
        %v1872 = vpop.permute.xlu0 %1871
        %1873 = vrot.lane.b32.xlu0 %v281, 90
        %v1874 = vpop.permute.xlu0 %1873
        %1875 = vrot.lane.b32.xlu0 %v282, 90
        %v1876 = vpop.permute.xlu0 %1875
        %1877 = vrot.lane.b32.xlu0 %v283, 90
        %v1878 = vpop.permute.xlu0 %1877
        %1879 = vrot.lane.b32.xlu0 %v284, 90
        %v1880 = vpop.permute.xlu0 %1879
        %1881 = vrot.lane.b32.xlu0 %v285, 90
        %v1882 = vpop.permute.xlu0 %1881
        %1883 = vrot.lane.b32.xlu0 %v286, 90
        %v1884 = vpop.permute.xlu0 %1883
        %vm1885 = vcmask 736256
        %v1886 = vsel %vm1885, %v1870, %v1872
        %v1887 = vsel %vm1885, %v1872, %v1874
        %v1888 = vsel %vm1885, %v1874, %v1876
        %v1889 = vsel %vm1885, %v1878, %v1880
        %v1890 = vsel %vm1885, %v1880, %v1882
        %v1891 = vsel %vm1885, %v1882, %v1884
        %v1899 = vsel %vm324, %v248, 0
        %v1902 = vsel %vm324, %v249, 0
        %1904 = vmatpush.msra.mxu0 0.0
        %1905 = vmatpush.msra.mxu0 0.0
        %1906 = vmatpush.msra.mxu0 0.0
        %1907 = vmatpush.msra.mxu0 0.0
        %1908 = vmatpush.msra.mxu0 0.0
        %1909 = vmatpush.msra.mxu0 0.0
        %1910 = vmatpush.msra.mxu0 0.0
        %1911 = vmatpush.msra.mxu0 0.0
        %1912 = vmatpush.msra.mxu0 0.0
        %1913 = vmatpush.msra.mxu0 0.0
        %1914 = vmatpush.msra.mxu0 0.0
        %1915 = vmatpush.msra.mxu0 0.0
        %1916 = vmatpush.msra.mxu0 0.0
        %1917 = vmatpush.msra.mxu0 0.0
        %1918 = vmatpush.msra.mxu0 %v1889
        %1919 = vmatpush.msra.mxu0 %v1886
        %1920 = vmatmul.f32.gmra.mxu0 %v1899
        %v1921 = vpop.f32.mrf.mxu0
        %v1922 = vadd.f32 0.0, %v1921
        %1923 = vmatmul.f32.gmra.mxu0 %v1902
        %v1924 = vpop.f32.mrf.mxu0
        %v1925 = vadd.f32 0.0, %v1924
        %1926 = vdwg.mxu0
        %1927 = vmatpush.msra.mxu0 0.0
        %1928 = vmatpush.msra.mxu0 0.0
        %1929 = vmatpush.msra.mxu0 0.0
        %1930 = vmatpush.msra.mxu0 0.0
        %1931 = vmatpush.msra.mxu0 0.0
        %1932 = vmatpush.msra.mxu0 0.0
        %1933 = vmatpush.msra.mxu0 0.0
        %1934 = vmatpush.msra.mxu0 0.0
        %1935 = vmatpush.msra.mxu0 0.0
        %1936 = vmatpush.msra.mxu0 0.0
        %1937 = vmatpush.msra.mxu0 0.0
        %1938 = vmatpush.msra.mxu0 0.0
        %1939 = vmatpush.msra.mxu0 0.0
        %1940 = vmatpush.msra.mxu0 0.0
        %1941 = vmatpush.msra.mxu0 %v1890
        %1942 = vmatpush.msra.mxu0 %v1887
        %1943 = vmatmul.f32.gmra.mxu0 %v1899
        %v1944 = vpop.f32.mrf.mxu0
        %v1945 = vadd.f32 0.0, %v1944
        %1946 = vmatmul.f32.gmra.mxu0 %v1902
        %v1947 = vpop.f32.mrf.mxu0
        %v1948 = vadd.f32 0.0, %v1947
        %1949 = vdwg.mxu0
        %1950 = vmatpush.msra.mxu0 0.0
        %1951 = vmatpush.msra.mxu0 0.0
        %1952 = vmatpush.msra.mxu0 0.0
        %1953 = vmatpush.msra.mxu0 0.0
        %1954 = vmatpush.msra.mxu0 0.0
        %1955 = vmatpush.msra.mxu0 0.0
        %1956 = vmatpush.msra.mxu0 0.0
        %1957 = vmatpush.msra.mxu0 0.0
        %1958 = vmatpush.msra.mxu0 0.0
        %1959 = vmatpush.msra.mxu0 0.0
        %1960 = vmatpush.msra.mxu0 0.0
        %1961 = vmatpush.msra.mxu0 0.0
        %1962 = vmatpush.msra.mxu0 0.0
        %1963 = vmatpush.msra.mxu0 0.0
        %1964 = vmatpush.msra.mxu0 %v1891
        %1965 = vmatpush.msra.mxu0 %v1888
        %1966 = vmatmul.f32.gmra.mxu0 %v1899
        %v1967 = vpop.f32.mrf.mxu0
        %v1968 = vadd.f32 0.0, %v1967
        %1969 = vmatmul.f32.gmra.mxu0 %v1902
        %v1970 = vpop.f32.mrf.mxu0
        %v1971 = vadd.f32 0.0, %v1970
        %1972 = vdwg.mxu0
        %v1973 = vadd.f32 %v1769, %v1922
        %v1974 = vadd.f32 %v1770, %v1945
        %v1975 = vadd.f32 %v1771, %v1968
        %v1976 = vadd.f32 %v1772, %v1925
        %v1977 = vadd.f32 %v1773, %v1948
        %v1978 = vadd.f32 %v1774, %v1971
        %1979 = vrot.lane.b32.xlu0 %v475, 90
        %v1980 = vpop.permute.xlu0 %1979
        %1981 = vrot.lane.b32.xlu0 %v476, 90
        %v1982 = vpop.permute.xlu0 %1981
        %1983 = vrot.lane.b32.xlu0 %v477, 90
        %v1984 = vpop.permute.xlu0 %1983
        %1985 = vrot.lane.b32.xlu0 %v478, 90
        %v1986 = vpop.permute.xlu0 %1985
        %1987 = vrot.lane.b32.xlu0 %v479, 90
        %v1988 = vpop.permute.xlu0 %1987
        %1989 = vrot.lane.b32.xlu0 %v480, 90
        %v1990 = vpop.permute.xlu0 %1989
        %1991 = vrot.lane.b32.xlu0 %v481, 90
        %v1992 = vpop.permute.xlu0 %1991
        %1993 = vrot.lane.b32.xlu0 %v482, 90
        %v1994 = vpop.permute.xlu0 %1993
        %v1995 = vsel %vm1885, %v1980, %v1982
        %v1996 = vsel %vm1885, %v1982, %v1984
        %v1997 = vsel %vm1885, %v1984, %v1986
        %v1998 = vsel %vm1885, %v1988, %v1990
        %v1999 = vsel %vm1885, %v1990, %v1992
        %v2000 = vsel %vm1885, %v1992, %v1994
        %v2008 = vsel %vm324, %v266, 0
        %2010 = vmatpush.msra.mxu0 0.0
        %2011 = vmatpush.msra.mxu0 0.0
        %2012 = vmatpush.msra.mxu0 0.0
        %2013 = vmatpush.msra.mxu0 0.0
        %2014 = vmatpush.msra.mxu0 0.0
        %2015 = vmatpush.msra.mxu0 0.0
        %2016 = vmatpush.msra.mxu0 0.0
        %2017 = vmatpush.msra.mxu0 0.0
        %2018 = vmatpush.msra.mxu0 0.0
        %2019 = vmatpush.msra.mxu0 0.0
        %2020 = vmatpush.msra.mxu0 0.0
        %2021 = vmatpush.msra.mxu0 0.0
        %2022 = vmatpush.msra.mxu0 0.0
        %2023 = vmatpush.msra.mxu0 0.0
        %2024 = vmatpush.msra.mxu0 %v1998
        %2025 = vmatpush.msra.mxu0 %v1995
        %2026 = vmatmul.f32.gmra.mxu0 %v2008
        %v2027 = vpop.f32.mrf.mxu0
        %v2028 = vadd.f32 0.0, %v2027
        %2029 = vdwg.mxu0
        %2030 = vmatpush.msra.mxu0 0.0
        %2031 = vmatpush.msra.mxu0 0.0
        %2032 = vmatpush.msra.mxu0 0.0
        %2033 = vmatpush.msra.mxu0 0.0
        %2034 = vmatpush.msra.mxu0 0.0
        %2035 = vmatpush.msra.mxu0 0.0
        %2036 = vmatpush.msra.mxu0 0.0
        %2037 = vmatpush.msra.mxu0 0.0
        %2038 = vmatpush.msra.mxu0 0.0
        %2039 = vmatpush.msra.mxu0 0.0
        %2040 = vmatpush.msra.mxu0 0.0
        %2041 = vmatpush.msra.mxu0 0.0
        %2042 = vmatpush.msra.mxu0 0.0
        %2043 = vmatpush.msra.mxu0 0.0
        %2044 = vmatpush.msra.mxu0 %v1999
        %2045 = vmatpush.msra.mxu0 %v1996
        %2046 = vmatmul.f32.gmra.mxu0 %v2008
        %v2047 = vpop.f32.mrf.mxu0
        %v2048 = vadd.f32 0.0, %v2047
        %2049 = vdwg.mxu0
        %2050 = vmatpush.msra.mxu0 0.0
        %2051 = vmatpush.msra.mxu0 0.0
        %2052 = vmatpush.msra.mxu0 0.0
        %2053 = vmatpush.msra.mxu0 0.0
        %2054 = vmatpush.msra.mxu0 0.0
        %2055 = vmatpush.msra.mxu0 0.0
        %2056 = vmatpush.msra.mxu0 0.0
        %2057 = vmatpush.msra.mxu0 0.0
        %2058 = vmatpush.msra.mxu0 0.0
        %2059 = vmatpush.msra.mxu0 0.0
        %2060 = vmatpush.msra.mxu0 0.0
        %2061 = vmatpush.msra.mxu0 0.0
        %2062 = vmatpush.msra.mxu0 0.0
        %2063 = vmatpush.msra.mxu0 0.0
        %2064 = vmatpush.msra.mxu0 %v2000
        %2065 = vmatpush.msra.mxu0 %v1997
        %2066 = vmatmul.f32.gmra.mxu0 %v2008
        %v2067 = vpop.f32.mrf.mxu0
        %v2068 = vadd.f32 0.0, %v2067
        %2069 = vdwg.mxu0
        %v2070 = vadd.f32 %v1866, %v2028
        %v2071 = vadd.f32 %v1867, %v2048
        %v2072 = vadd.f32 %v1868, %v2068
        %v2073 = vadd.f32 %v1976, %v2070
        %v2074 = vadd.f32 %v1977, %v2071
        %v2075 = vadd.f32 %v1978, %v2072
        %v2076 = vadd.f32 %v2073, 1e-12
        %v2077 = vadd.f32 %v2074, 1e-12
        %v2078 = vadd.f32 %v2075, 1e-12
        %v2079 = vrsqrt.pop %v2076
        %v2080 = vmul.f32 %v2079, %v2076
        %v2081 = vmul.f32 %v2080, %v2079
        %v2082 = vmul.f32 0.5, %v2081
        %v2083 = vsub.f32 1.5, %v2082
        %v2084 = vmul.f32 %v2079, %v2083
        %vm2085 = vweird.f32 %v2076
        %vm2086 = vweird.f32 %v2079
        %vm2087 = vmor %vm2085, %vm2086
        %v2088 = vsel %vm2087, %v2079, %v2084
        %v2089 = vrsqrt.pop %v2077
        %v2090 = vmul.f32 %v2089, %v2077
        %v2091 = vmul.f32 %v2090, %v2089
        %v2092 = vmul.f32 0.5, %v2091
        %v2093 = vsub.f32 1.5, %v2092
        %v2094 = vmul.f32 %v2089, %v2093
        %vm2095 = vweird.f32 %v2077
        %vm2096 = vweird.f32 %v2089
        %vm2097 = vmor %vm2095, %vm2096
        %v2098 = vsel %vm2097, %v2089, %v2094
        %v2099 = vrsqrt.pop %v2078
        %v2100 = vmul.f32 %v2099, %v2078
        %v2101 = vmul.f32 %v2100, %v2099
        %v2102 = vmul.f32 0.5, %v2101
        %v2103 = vsub.f32 1.5, %v2102
        %v2104 = vmul.f32 %v2099, %v2103
        %vm2105 = vweird.f32 %v2078
        %vm2106 = vweird.f32 %v2099
        %vm2107 = vmor %vm2105, %vm2106
        %v2108 = vsel %vm2107, %v2099, %v2104
        %v2109 = vmul.f32 %v2076, 0.5
        %v2110 = vmul.f32 %v2077, 0.5
        %v2111 = vmul.f32 %v2078, 0.5
        %v2112 = vmul.f32 %v2109, %v2088
        %v2113 = vmul.f32 %v2110, %v2098
        %v2114 = vmul.f32 %v2111, %v2108
        %v2115 = vmul.f32 %v2112, %v2088
        %v2116 = vmul.f32 %v2113, %v2098
        %v2117 = vmul.f32 %v2114, %v2108
        %v2118 = vsub.f32 1.5, %v2115
        %v2119 = vsub.f32 1.5, %v2116
        %v2120 = vsub.f32 1.5, %v2117
        %v2121 = vmul.f32 %v2088, %v2118
        %v2122 = vmul.f32 %v2098, %v2119
        %v2123 = vmul.f32 %v2108, %v2120
        %v2124 = vmul.f32 %v2076, %v2121
        %v2125 = vmul.f32 %v2077, %v2122
        %v2126 = vmul.f32 %v2078, %v2123
        %v2127 = vmul.f32 %v1973, %v2121
        %v2128 = vmul.f32 %v1974, %v2122
        %v2129 = vmul.f32 %v1975, %v2123
        %v2130 = vmul.f32 %v2127, 0.70710677
        %v2131 = vmul.f32 %v2128, 0.70710677
        %v2132 = vmul.f32 %v2129, 0.70710677
        %vm2133 = vcmp.ge.f32.partialorder %v2130, 0.0
        %vm2134 = vcmp.ge.f32.partialorder %v2131, 0.0
        %vm2135 = vcmp.ge.f32.partialorder %v2132, 0.0
        %v2136 = vsel %vm2133, 1.0, -1.0
        %v2137 = vsel %vm2134, 1.0, -1.0
        %v2138 = vsel %vm2135, 1.0, -1.0
        %v2139 = vand.u32 2147483647, %v2130
        %v2140 = vand.u32 2147483647, %v2131
        %v2141 = vand.u32 2147483647, %v2132
        %v2142 = vmul.f32 %v2139, 0.3275911
        %v2143 = vmul.f32 %v2140, 0.3275911
        %v2144 = vmul.f32 %v2141, 0.3275911
        %v2145 = vadd.f32 %v2142, 1.0
        %v2146 = vadd.f32 %v2143, 1.0
        %v2147 = vadd.f32 %v2144, 1.0
        %v2148 = vrcp.pop %v2145
        %v2149 = vrcp.pop %v2146
        %v2150 = vrcp.pop %v2147
        %v2151 = vmul.f32 %v2145, %v2148
        %v2152 = vmul.f32 %v2146, %v2149
        %v2153 = vmul.f32 %v2147, %v2150
        %v2154 = vsub.f32 2.0, %v2151
        %v2155 = vsub.f32 2.0, %v2152
        %v2156 = vsub.f32 2.0, %v2153
        %v2157 = vmul.f32 %v2148, %v2154
        %v2158 = vmul.f32 %v2149, %v2155
        %v2159 = vmul.f32 %v2150, %v2156
        %v2160 = vmul.f32 %v2127, -0.5
        %v2161 = vmul.f32 %v2128, -0.5
        %v2162 = vmul.f32 %v2129, -0.5
        %v2163 = vmul.f32 %v2160, %v2127
        %v2164 = vmul.f32 %v2161, %v2128
        %v2165 = vmul.f32 %v2162, %v2129
        %v2166 = vmul.f32 %v2163, 1.442695
        %v2167 = vpow.pop %v2166
        %v2168 = vmul.f32 %v2164, 1.442695
        %v2169 = vpow.pop %v2168
        %v2170 = vmul.f32 %v2165, 1.442695
        %v2171 = vpow.pop %v2170
        %v2172 = vmul.f32 %v2157, 1.0614054
        %v2173 = vmul.f32 %v2158, 1.0614054
        %v2174 = vmul.f32 %v2159, 1.0614054
        %v2175 = vadd.f32 %v2172, -1.4531521
        %v2176 = vadd.f32 %v2173, -1.4531521
        %v2177 = vadd.f32 %v2174, -1.4531521
        %v2178 = vmul.f32 %v2157, %v2175
        %v2179 = vmul.f32 %v2158, %v2176
        %v2180 = vmul.f32 %v2159, %v2177
        %v2181 = vadd.f32 %v2178, 1.4214138
        %v2182 = vadd.f32 %v2179, 1.4214138
        %v2183 = vadd.f32 %v2180, 1.4214138
        %v2184 = vmul.f32 %v2157, %v2181
        %v2185 = vmul.f32 %v2158, %v2182
        %v2186 = vmul.f32 %v2159, %v2183
        %v2187 = vadd.f32 %v2184, -0.28449672
        %v2188 = vadd.f32 %v2185, -0.28449672
        %v2189 = vadd.f32 %v2186, -0.28449672
        %v2190 = vmul.f32 %v2157, %v2187
        %v2191 = vmul.f32 %v2158, %v2188
        %v2192 = vmul.f32 %v2159, %v2189
        %v2193 = vadd.f32 %v2190, 0.2548296
        %v2194 = vadd.f32 %v2191, 0.2548296
        %v2195 = vadd.f32 %v2192, 0.2548296
        %v2196 = vmul.f32 %v2157, %v2193
        %v2197 = vmul.f32 %v2158, %v2194
        %v2198 = vmul.f32 %v2159, %v2195
        %v2199 = vmul.f32 %v2196, %v2167
        %v2200 = vmul.f32 %v2197, %v2169
        %v2201 = vmul.f32 %v2198, %v2171
        %v2202 = vsub.f32 1.0, %v2199
        %v2203 = vsub.f32 1.0, %v2200
        %v2204 = vsub.f32 1.0, %v2201
        %v2205 = vmul.f32 %v2136, %v2202
        %v2206 = vmul.f32 %v2137, %v2203
        %v2207 = vmul.f32 %v2138, %v2204
        %v2208 = vadd.f32 %v2205, 1.0
        %v2209 = vadd.f32 %v2206, 1.0
        %v2210 = vadd.f32 %v2207, 1.0
        %v2211 = vmul.f32 %v2208, 0.5
        %v2212 = vmul.f32 %v2209, 0.5
        %v2213 = vmul.f32 %v2210, 0.5
        %v2214 = vmul.f32 %v2167, 0.3989423
        %v2215 = vmul.f32 %v2169, 0.3989423
        %v2216 = vmul.f32 %v2171, 0.3989423
        %v2217 = vmul.f32 %v1973, %v2211
        %v2218 = vmul.f32 %v1974, %v2212
        %v2219 = vmul.f32 %v1975, %v2213
        %v2220 = vmul.f32 %v2124, %v2214
        %v2221 = vmul.f32 %v2125, %v2215
        %v2222 = vmul.f32 %v2126, %v2216
        %v2223 = vadd.f32 %v2217, %v2220
        %v2224 = vadd.f32 %v2218, %v2221
        %v2225 = vadd.f32 %v2219, %v2222
        %v2226 = vmul.f32 %v1973, %v1973
        %v2227 = vmul.f32 %v1974, %v1974
        %v2228 = vmul.f32 %v1975, %v1975
        %v2229 = vadd.f32 %v2076, %v2226
        %v2230 = vadd.f32 %v2077, %v2227
        %v2231 = vadd.f32 %v2078, %v2228
        %v2232 = vmul.f32 %v2229, %v2211
        %v2233 = vmul.f32 %v2230, %v2212
        %v2234 = vmul.f32 %v2231, %v2213
        %v2235 = vmul.f32 %v1973, %v2124
        %v2236 = vmul.f32 %v1974, %v2125
        %v2237 = vmul.f32 %v1975, %v2126
        %v2238 = vmul.f32 %v2235, %v2214
        %v2239 = vmul.f32 %v2236, %v2215
        %v2240 = vmul.f32 %v2237, %v2216
        %v2241 = vadd.f32 %v2232, %v2238
        %v2242 = vadd.f32 %v2233, %v2239
        %v2243 = vadd.f32 %v2234, %v2240
        %v2244 = vmul.f32 %v2223, %v2223
        %v2245 = vmul.f32 %v2224, %v2224
        %v2246 = vmul.f32 %v2225, %v2225
        %v2247 = vsub.f32 %v2241, %v2244
        %v2248 = vsub.f32 %v2242, %v2245
        %v2249 = vsub.f32 %v2243, %v2246
        %v2250 = vmax.f32 %v2247, 0.0
        %v2251 = vmax.f32 %v2248, 0.0
        %v2252 = vmax.f32 %v2249, 0.0
        %2253 = vst [vmem:[%s223] sm:$0xff] %v2223
        %2254 = vst [vmem:[%s223 + $0x8] sm:$0xff] %v2224
        %2255 = vst [vmem:[%s223 + $0x10] sm:$0xff] %v2225
        %2256 = vst [vmem:[%s223 + $0x18] sm:$0xff] %v2250
        %2257 = vst [vmem:[%s223 + $0x20] sm:$0xff] %v2251
        %2258 = vst [vmem:[%s223 + $0x28] sm:$0xff] %v2252
        %s2259 = sand.u32 %s97, 1
        %s2260 = scalar_lea.sflag [#allocation4], %s2259
        %s2261 = sand.u32 %s97, 1
        %s2262 = smul.addr %s2261, 48
        %s2263 = scalar_lea.vmem [#allocation8], %s2262
        // Predicated region
        $region45: #{tpu_custom_call.1} parent=31 // pred_check
          %p2264 = pneg %p107
        $region46: #{tpu_custom_call.1} parent=31 // pred_check_branch
          %2266 = sbr.rel (%p2264) target = $region48
        $region47: #{tpu_custom_call.1} parent=31 // pred_region
          %2268 = vsyncadd %s2260, 0
          %s2269 = smul.addr %s21, 6
          %s2270 = smul.addr %s2269, 8
          %s2271 = scalar_lea.hbm %s3, %s2270
          %s2272 = sshll.u32 %s2263, 4
          %s2273 = int_to_ptr.vmem [resolvable:$true] %s2272
          %s2274 = sshll.u32 %s2271, 4
          %s2275 = int_to_ptr.hbm [resolvable:$true] %s2274
          %2280 = dma.vmem_to_hbm [thread:$0]  %s2273, 768, %s2275, %s2260, 384, 384, 24
        $region48: #{tpu_custom_call.1} parent=31 // pred_fallthru
          _
      $region32: #{tpu_custom_call.1} parent=5 // pred_fallthru
        _
      %p2281 = scmp.le.s32.totalorder 2, %s16
      // Predicated region
      $region49: #{tpu_custom_call.1} parent=5 // pred_check
        %p2282 = pneg %p2281
      $region50: #{tpu_custom_call.1} parent=5 // pred_check_branch
        %2284 = sbr.rel (%p2282) target = $region52
      $region51: #{tpu_custom_call.1} parent=5 // pred_region
        %s2285 = ssub.s32 %s16, 2
        // Predicated region
        $region53: #{tpu_custom_call.1} parent=51 // pred_check
          %p2286 = pneg %p113
        $region54: #{tpu_custom_call.1} parent=51 // pred_check_branch
          %2288 = sbr.rel (%p2286) target = $region56
        $region55: #{tpu_custom_call.1} parent=51 // pred_region
          %s2289 = sand.u32 %s98, 1
          %s2290 = scalar_lea.sflag [#allocation4], %s2289
          %s2291 = sand.u32 %s98, 1
          %s2292 = smul.addr %s2291, 48
          %s2293 = scalar_lea.vmem [#allocation8], %s2292
          %2295 = dma.done %s2290, 768
        $region56: #{tpu_custom_call.1} parent=51 // pred_fallthru
          _
      $region52: #{tpu_custom_call.1} parent=5 // pred_fallthru
        _
    $region6: #{tpu_custom_call.1} parent=1 // loop_footer
      %s20 = sadd.s32 1, %s16
    $region7: #{tpu_custom_call.1} parent=1 // loop_footer_branch
      %15 = sbr.rel target = $region3
    $region8: #{tpu_custom_call.1} parent=1 // loop_exit
      _
    %2296 = vsyncpa [#allocation3], 1
    %s2297 = scalar_lea.sflag [#allocation3], 1
    %2298 = vsyncpa %s2297, 1
    %2299 = vsyncpa [#allocation6], 1
    %2300 = vsyncpa [#allocation4], 1
    %s2301 = scalar_lea.sflag [#allocation4], 1
    %2302 = vsyncpa %s2301, 1

</llo_original>
